<compile_context>
chip_gen: v7x
topology: tpu7x:2x2x1
jax: 0.10.0
libtpu: 0.0.40
codegen_flags: <defaults>
</compile_context>

<pallas_src>
import functools

import jax
import jax.numpy as jnp
from jax.experimental import pallas as pl
from jax.experimental.pallas import tpu as pltpu


def _lstm_cell_kernel(x_ref, h_ref, c_ref, w_ref, b_ref,
                      h_out_ref, c_out_ref, *, ic, th):
    # x_ref: (B, ic) f32   h_ref: (B, hc) f32   c_ref: (B, th) f32
    # w_ref: (ic+hc, 4*th) bf16   b_ref: (1, 4*th) f32
    x_bf = x_ref[...].astype(jnp.bfloat16)
    h_bf = h_ref[...].astype(jnp.bfloat16)

    # Two K-split MXU pushes against the fused weight slab (same MXU cycles as
    # one fused push over ic+hc), f32 accumulation, pre-summed bias.
    gates = (jnp.dot(x_bf, w_ref[:ic, :], preferred_element_type=jnp.float32)
             + jnp.dot(h_bf, w_ref[ic:, :], preferred_element_type=jnp.float32)
             + b_ref[...])                                        # (B, 4*th)

    # Gate order within the tile is [f, i, o, g]; sigmoid the contiguous
    # [f|i|o] slab in one pass (fewer EUP pushes, lane-aligned slices).
    sig = jax.nn.sigmoid(gates[:, : 3 * th])
    forget_gate = sig[:, 0 * th:1 * th]
    input_gate = sig[:, 1 * th:2 * th]
    output_gate = sig[:, 2 * th:3 * th]
    modulation_gate = jnp.tanh(gates[:, 3 * th:])

    c_new = (c_ref[...].astype(jnp.float32) * forget_gate
             + modulation_gate * input_gate)
    h_new = output_gate * jnp.tanh(c_new)

    c_out_ref[...] = c_new.astype(c_out_ref.dtype)
    h_out_ref[...] = h_new.astype(h_out_ref.dtype)


def choose_hidden_tile(hc, ic, *, weight_budget_bytes=16 << 20,
                       weight_bytes_per_elem=2, n_buffers=2):
    """Largest hidden tile (divisor of hc, multiple of 128 when possible)
    whose pipelined weight tile fits a conservative VMEM budget that is safe
    on v5e/v6e (128 MiB) and v7x (64 MiB physical / 32 MiB scoped default)."""
    k = ic + hc

    def fits(th):
        return k * 4 * th * weight_bytes_per_elem * n_buffers <= weight_budget_bytes

    if hc <= 128 or fits(hc):
        return hc
    candidates = [d for d in range(128, hc, 128) if hc % d == 0 and fits(d)]
    return max(candidates) if candidates else min(128, hc)


def prepare_lstm_params(wi_t, bi, wh_t, bh, *, hc, th, param_dtype=jnp.bfloat16):
    """One-time parameter transform (not per-call work).

    Args:
      wi_t: (ic, 4*hc)  == nn.Linear(ic, 4*hc).weight.T
      bi:   (4*hc,)
      wh_t: (hc, 4*hc)  == nn.Linear(hc, 4*hc).weight.T
      bh:   (4*hc,)
    Returns:
      w_tiled: (hc//th, ic+hc, 4*th) param_dtype — for hidden tile j, the
               columns of all four gates for hidden units [j*th, (j+1)*th),
               ordered [f | i | o | g] within the tile.
      b_tiled: (hc//th, 1, 4*th) f32 — pre-summed (bi + bh), same layout.
    """
    ic = wi_t.shape[0]
    n_tiles = hc // th
    assert n_tiles * th == hc

    w_cat = jnp.concatenate([wi_t, wh_t], axis=0)                 # (K, 4*hc)
    k = ic + hc
    w4 = w_cat.reshape(k, 4, n_tiles, th)                         # col = g*hc + j*th + t
    w_tiled = jnp.transpose(w4, (2, 0, 1, 3)).reshape(n_tiles, k, 4 * th)

    b4 = (bi + bh).reshape(4, n_tiles, th)
    b_tiled = jnp.transpose(b4, (1, 0, 2)).reshape(n_tiles, 1, 4 * th)
    return w_tiled.astype(param_dtype), b_tiled.astype(jnp.float32)


def lstm_cell(x, h, c, w_tiled, b_tiled, *, th):
    """Pallas LSTM cell: fused bf16 MXU matmul, no wrapper-side concat.

    Args:
      x: (B, ic) f32, h/c: (B, hc) f32
      w_tiled, b_tiled: outputs of prepare_lstm_params.
    Returns:
      (h_new, c_new), each (B, hc) f32.
    """
    B, ic = x.shape
    hc = h.shape[1]
    K = ic + hc
    n_tiles = hc // th
    assert n_tiles * th == hc
    assert w_tiled.shape == (n_tiles, K, 4 * th)
    assert b_tiled.shape == (n_tiles, 1, 4 * th)

    kernel = functools.partial(_lstm_cell_kernel, ic=ic, th=th)
    h_new, c_new = pl.pallas_call(
        kernel,
        out_shape=(
            jax.ShapeDtypeStruct((B, hc), h.dtype),
            jax.ShapeDtypeStruct((B, hc), c.dtype),
        ),
        grid=(n_tiles,),
        in_specs=[
            pl.BlockSpec((B, ic), lambda j: (0, 0)),               # x (resident)
            pl.BlockSpec((B, hc), lambda j: (0, 0)),               # h (resident)
            pl.BlockSpec((B, th), lambda j: (0, j)),               # c tile
            pl.BlockSpec((None, K, 4 * th), lambda j: (j, 0, 0)),  # weight tile
            pl.BlockSpec((None, 1, 4 * th), lambda j: (j, 0, 0)),  # bias tile
        ],
        out_specs=(
            pl.BlockSpec((B, th), lambda j: (0, j)),               # h tile
            pl.BlockSpec((B, th), lambda j: (0, j)),               # c tile
        ),
        compiler_params=pltpu.CompilerParams(
            dimension_semantics=("parallel",),   # v7x: 2 TCs split tiles when n_tiles > 1
        ),
    )(x, h, c, w_tiled, b_tiled)
    return h_new, c_new


def lstm_cell_ref(x, h, c, wi_t, bi, wh_t, bh):
    """Pure-JAX f32 reference matching the PyTorch module semantics."""
    hc = h.shape[1]
    gates = x @ wi_t + bi + h @ wh_t + bh
    forget_gate = jax.nn.sigmoid(gates[:, 0 * hc:1 * hc])
    input_gate = jax.nn.sigmoid(gates[:, 1 * hc:2 * hc])
    output_gate = jax.nn.sigmoid(gates[:, 2 * hc:3 * hc])
    modulation_gate = jnp.tanh(gates[:, 3 * hc:4 * hc])
    c_new = c * forget_gate + modulation_gate * input_gate
    h_new = output_gate * jnp.tanh(c_new)
    return h_new, c_new


if __name__ == "__main__":
    # Small, lane/sublane-friendly shapes: hc multiple of 128 so gate slices /
    # output stores are whole-vreg lane-dense; B=16 fully packs bf16 sublanes.
    B, ic, hc = 16, 128, 256
    th = choose_hidden_tile(hc, ic)   # demo: th == hc -> single grid step

    key = jax.random.PRNGKey(0)
    kx, kh, kc, kwi, kbi, kwh, kbh = jax.random.split(key, 7)

    x = jax.random.normal(kx, (B, ic), dtype=jnp.float32)
    h = jax.random.normal(kh, (B, hc), dtype=jnp.float32)
    c = jax.random.normal(kc, (B, hc), dtype=jnp.float32)

    # Deterministic PyTorch-style uniform(-1/sqrt(fan_in), 1/sqrt(fan_in)) init.
    bound_i = 1.0 / float(ic) ** 0.5
    bound_h = 1.0 / float(hc) ** 0.5
    wi_t = jax.random.uniform(kwi, (ic, 4 * hc), jnp.float32, -bound_i, bound_i)
    bi = jax.random.uniform(kbi, (4 * hc,), jnp.float32, -bound_i, bound_i)
    wh_t = jax.random.uniform(kwh, (hc, 4 * hc), jnp.float32, -bound_h, bound_h)
    bh = jax.random.uniform(kbh, (4 * hc,), jnp.float32, -bound_h, bound_h)

    # One-time parameter transform: fused + gate-tile-major + bf16 + pre-summed bias.
    w_tiled, b_tiled = prepare_lstm_params(wi_t, bi, wh_t, bh, hc=hc, th=th)

    run = jax.jit(functools.partial(lstm_cell, th=th))
    h_new, c_new = run(x, h, c, w_tiled, b_tiled)
    jax.block_until_ready((h_new, c_new))

    h_ref, c_ref = lstm_cell_ref(x, h, c, wi_t, bi, wh_t, bh)
    # bf16 matmul inputs (f32 accumulation, f32 gate math) vs pure-f32 reference.
    assert jnp.allclose(h_new, h_ref, atol=2e-2, rtol=2e-2), float(
        jnp.max(jnp.abs(h_new - h_ref)))
    assert jnp.allclose(c_new, c_ref, atol=2e-2, rtol=2e-2), float(
        jnp.max(jnp.abs(c_new - c_ref)))

    print("KERNEL_OK")
</pallas_src>

<mosaic_0001>
module attributes {stable_mosaic.version = 11 : i64} {
  func.func @_lstm_cell_kernel(%arg0: i32, %arg1: memref<16x128xf32, #tpu.memory_space<vmem>>, %arg2: memref<16x256xf32, #tpu.memory_space<vmem>>, %arg3: memref<16x256xf32, #tpu.memory_space<vmem>>, %arg4: memref<1x384x1024xbf16, #tpu.memory_space<vmem>>, %arg5: memref<1x1x1024xf32, #tpu.memory_space<vmem>>, %arg6: memref<16x256xf32, #tpu.memory_space<vmem>>, %arg7: memref<16x256xf32, #tpu.memory_space<vmem>>) attributes {dimension_semantics = [#tpu.dimension_semantics<parallel>], iteration_bounds = array<i64: 1>, scalar_prefetch = 0 : i64, scratch_operands = 0 : i64, tpu.core_type = #tpu.core_type<tc>, window_params = [{pipeline_mode = #tpu.pipeline_mode<synchronous>, transform_indices = @transform_0, window_bounds = array<i64: 16, 128>}, {pipeline_mode = #tpu.pipeline_mode<synchronous>, transform_indices = @transform_1, window_bounds = array<i64: 16, 256>}, {transform_indices = @transform_2, window_bounds = array<i64: 16, 256>}, {transform_indices = @transform_3, window_bounds = array<i64: 1, 384, 1024>}, {transform_indices = @transform_4, window_bounds = array<i64: 1, 1, 1024>}, {transform_indices = @transform_5, window_bounds = array<i64: 16, 256>}, {transform_indices = @transform_6, window_bounds = array<i64: 16, 256>}]} {
    %c0 = arith.constant 0 : index
    %c0_0 = arith.constant 0 : index
    %0 = vector.load %arg1[%c0, %c0_0] : memref<16x128xf32, #tpu.memory_space<vmem>>, vector<16x128xf32>
    %1 = arith.truncf %0 : vector<16x128xf32> to vector<16x128xbf16>
    %c0_1 = arith.constant 0 : index
    %c0_2 = arith.constant 0 : index
    %2 = vector.load %arg2[%c0_1, %c0_2] : memref<16x256xf32, #tpu.memory_space<vmem>>, vector<16x256xf32>
    %3 = arith.truncf %2 : vector<16x256xf32> to vector<16x256xbf16>
    %c0_3 = arith.constant 0 : index
    %c0_4 = arith.constant 0 : index
    %c0_5 = arith.constant 0 : index
    %4 = vector.load %arg4[%c0_3, %c0_4, %c0_5] : memref<1x384x1024xbf16, #tpu.memory_space<vmem>>, vector<1x128x1024xbf16>
    %5 = vector.shape_cast %4 : vector<1x128x1024xbf16> to vector<128x1024xbf16>
    %cst = arith.constant dense<0.000000e+00> : vector<16x1024xf32>
    %6 = tpu.matmul %1, %5, %cst {dimension_numbers = #tpu.dot_dimension_numbers<[1], [0], [0], [1], [0, 0, 1, 1], [], []>} : vector<16x128xbf16>, vector<128x1024xbf16>, vector<16x1024xf32> -> vector<16x1024xf32>
    %c0_6 = arith.constant 0 : index
    %c128 = arith.constant 128 : index
    %c0_7 = arith.constant 0 : index
    %7 = vector.load %arg4[%c0_6, %c128, %c0_7] : memref<1x384x1024xbf16, #tpu.memory_space<vmem>>, vector<1x256x1024xbf16>
    %8 = vector.shape_cast %7 : vector<1x256x1024xbf16> to vector<256x1024xbf16>
    %cst_8 = arith.constant dense<0.000000e+00> : vector<16x1024xf32>
    %9 = tpu.matmul %3, %8, %cst_8 {dimension_numbers = #tpu.dot_dimension_numbers<[1], [0], [0], [1], [0, 0, 1, 1], [], []>} : vector<16x256xbf16>, vector<256x1024xbf16>, vector<16x1024xf32> -> vector<16x1024xf32>
    %10 = arith.addf %6, %9 : vector<16x1024xf32>
    %c0_9 = arith.constant 0 : index
    %c0_10 = arith.constant 0 : index
    %c0_11 = arith.constant 0 : index
    %11 = vector.load %arg5[%c0_9, %c0_10, %c0_11] : memref<1x1x1024xf32, #tpu.memory_space<vmem>>, vector<1x1x1024xf32>
    %12 = vector.shape_cast %11 : vector<1x1x1024xf32> to vector<1x1024xf32>
    %13 = vector.broadcast %12 : vector<1x1024xf32> to vector<16x1024xf32>
    %14 = arith.addf %10, %13 : vector<16x1024xf32>
    %15 = vector.extract_strided_slice %14 {offsets = [0, 0], sizes = [16, 768], strides = [1, 1]} : vector<16x1024xf32> to vector<16x768xf32>
    %16 = arith.negf %15 : vector<16x768xf32>
    %17 = math.exp %16 : vector<16x768xf32>
    %cst_12 = arith.constant 1.000000e+00 : f32
    %18 = vector.broadcast %cst_12 : f32 to vector<16x768xf32>
    %19 = arith.addf %18, %17 : vector<16x768xf32>
    %20 = arith.divf %18, %19 : vector<16x768xf32>
    %21 = vector.extract_strided_slice %20 {offsets = [0, 0], sizes = [16, 256], strides = [1, 1]} : vector<16x768xf32> to vector<16x256xf32>
    %22 = vector.extract_strided_slice %20 {offsets = [0, 256], sizes = [16, 256], strides = [1, 1]} : vector<16x768xf32> to vector<16x256xf32>
    %23 = vector.extract_strided_slice %20 {offsets = [0, 512], sizes = [16, 256], strides = [1, 1]} : vector<16x768xf32> to vector<16x256xf32>
    %24 = vector.extract_strided_slice %14 {offsets = [0, 768], sizes = [16, 256], strides = [1, 1]} : vector<16x1024xf32> to vector<16x256xf32>
    %25 = math.tanh %24 : vector<16x256xf32>
    %c0_13 = arith.constant 0 : index
    %c0_14 = arith.constant 0 : index
    %26 = vector.load %arg3[%c0_13, %c0_14] : memref<16x256xf32, #tpu.memory_space<vmem>>, vector<16x256xf32>
    %27 = arith.mulf %26, %21 : vector<16x256xf32>
    %28 = arith.mulf %25, %22 : vector<16x256xf32>
    %29 = arith.addf %27, %28 : vector<16x256xf32>
    %30 = math.tanh %29 : vector<16x256xf32>
    %31 = arith.mulf %23, %30 : vector<16x256xf32>
    %c0_15 = arith.constant 0 : index
    %c0_16 = arith.constant 0 : index
    %32 = vector.load %arg7[%c0_15, %c0_16] : memref<16x256xf32, #tpu.memory_space<vmem>>, vector<16x256xf32>
    tpu.vector_store %arg7[%c0_15, %c0_16], %29 {strides = array<i32>} : memref<16x256xf32, #tpu.memory_space<vmem>>, vector<16x256xf32>,
    %c0_17 = arith.constant 0 : index
    %c0_18 = arith.constant 0 : index
    %33 = vector.load %arg6[%c0_17, %c0_18] : memref<16x256xf32, #tpu.memory_space<vmem>>, vector<16x256xf32>
    tpu.vector_store %arg6[%c0_17, %c0_18], %31 {strides = array<i32>} : memref<16x256xf32, #tpu.memory_space<vmem>>, vector<16x256xf32>,
    return
  }
  func.func @transform_0(%arg0: i32) -> (i32, i32) {
    %c0_i32 = arith.constant 0 : i32
    %c0_i32_0 = arith.constant 0 : i32
    %c0_i32_1 = arith.constant 0 : i32
    return %c0_i32, %c0_i32_0 : i32, i32
  }
  func.func @transform_1(%arg0: i32) -> (i32, i32) {
    %c0_i32 = arith.constant 0 : i32
    %c0_i32_0 = arith.constant 0 : i32
    %c0_i32_1 = arith.constant 0 : i32
    return %c0_i32, %c0_i32_0 : i32, i32
  }
  func.func @transform_2(%arg0: i32) -> (i32, i32) {
    %c0_i32 = arith.constant 0 : i32
    %c0_i32_0 = arith.constant 0 : i32
    return %c0_i32, %arg0 : i32, i32
  }
  func.func @transform_3(%arg0: i32) -> (i32, i32, i32) {
    %c0_i32 = arith.constant 0 : i32
    %c0_i32_0 = arith.constant 0 : i32
    %c0_i32_1 = arith.constant 0 : i32
    return %arg0, %c0_i32, %c0_i32_0 : i32, i32, i32
  }
  func.func @transform_4(%arg0: i32) -> (i32, i32, i32) {
    %c0_i32 = arith.constant 0 : i32
    %c0_i32_0 = arith.constant 0 : i32
    %c0_i32_1 = arith.constant 0 : i32
    return %arg0, %c0_i32, %c0_i32_0 : i32, i32, i32
  }
  func.func @transform_5(%arg0: i32) -> (i32, i32) {
    %c0_i32 = arith.constant 0 : i32
    %c0_i32_0 = arith.constant 0 : i32
    return %c0_i32, %arg0 : i32, i32
  }
  func.func @transform_6(%arg0: i32) -> (i32, i32) {
    %c0_i32 = arith.constant 0 : i32
    %c0_i32_0 = arith.constant 0 : i32
    return %c0_i32, %arg0 : i32, i32
  }
}

</mosaic_0001>

<llo_original>
// kernel: lstm_cell.1
$region0: #{lstm_cell.1}
  #allocation0 [shape = 'u32[]', space=smem, size = 0x4, offset = 0x4, fixed_abs, tag = 'smem constant byte address 0x4 - core index']
  #allocation1 [shape = 'u32[144,128]{1,0:T(1,128)}', space=vmem, size = 0x12000, scoped, tag = 'internal scratch']
  %s0 = inlined_call_operand.hbm [shape: f32[16,128], index: 0, kind: input, shape index: {}]
  %s1 = inlined_call_operand.hbm [shape: f32[16,256], index: 1, kind: input, shape index: {}]
  %s2 = inlined_call_operand.hbm [shape: f32[16,256], index: 2, kind: input, shape index: {}]
  %s3 = inlined_call_operand.hbm [shape: bf16[1,384,1024], index: 3, kind: input, shape index: {}]
  %s4 = inlined_call_operand.vmem [shape: f32[1,1,1024], index: 4, kind: input, shape index: {}]
  %s5 = inlined_call_operand.hbm [shape: f32[16,256], index: 5, kind: output, shape index: {0}]
  %s6 = inlined_call_operand.hbm [shape: f32[16,256], index: 6, kind: output, shape index: {1}]
  %7 = xla_tuple %s5, %s6
  %s8 = sld [smem:[#allocation0]]
  $region54: #{lstm_cell.1} parent=0
    _
  %s10 = ssub.s32 1, %s8
  %s11 = scalar_select 0, %s10, %s8
  $region1: #{lstm_cell.1} parent=0
    #allocation2 [shape = 'u8[8192]{0}', space=vmem, size = 0x2000, scoped, tag = 'input window, operand 0, single buffered']
    #allocation3 [shape = 's32[1]{0}', space=sflag, size = 0x4, scoped, tag = 'scoped memory for lstm_cell.1']
    #allocation4 [shape = 's32[1]{0}', space=sflag, size = 0x4, scoped, tag = 'scoped memory for lstm_cell.1']
    #allocation5 [shape = 'u8[16384]{0}', space=vmem, size = 0x4000, scoped, tag = 'input window, operand 1, single buffered']
    #allocation6 [shape = 's32[1]{0}', space=sflag, size = 0x4, scoped, tag = 'scoped memory for lstm_cell.1']
    #allocation7 [shape = 'u8[16384]{0}', space=vmem, size = 0x4000, scoped, tag = 'input window, operand 2, single buffered']
    #allocation8 [shape = 'u8[786432]{0}', space=vmem, size = 0xc0000, scoped, tag = 'input window, operand 3, single buffered']
    #allocation9 [shape = 's32[1]{0}', space=sflag, size = 0x4, scoped, tag = 'scoped memory for lstm_cell.1']
    #allocation10 [shape = 'u8[16384]{0}', space=vmem, size = 0x4000, scoped, tag = 'output window, operand 0, single buffered']
    #allocation11 [shape = 'u8[16384]{0}', space=vmem, size = 0x4000, scoped, tag = 'output window, operand 1, single buffered']
    #allocation12 [shape = 's32[1]{0}', space=sflag, size = 0x4, scoped, tag = 'scoped memory for lstm_cell.1']
    %12 = vsyncpa [#allocation3], 0
    %13 = vsyncpa [#allocation6], 0
    %14 = vsyncpa [#allocation9], 0
    %15 = vsyncpa [#allocation4], 0
    %16 = vsyncpa [#allocation12], 0
    // Predicated region
    $region2: #{lstm_cell.1} parent=1 // pred_check
      _
    $region3: #{lstm_cell.1} parent=1 // pred_check_branch
      %18 = sbr.rel (0) target = $region5
    $region4: #{lstm_cell.1} parent=1 // pred_region
      %s20 = ssub.s32 256, 256
      %21 = vsyncadd [#allocation3], %s20
      %s22 = sshll.u32 [#allocation2], 4
      %s23 = int_to_ptr.vmem [resolvable:$true] %s22
      %28 = dma.hbm_to_vmem [thread:$0]  %s0, 256, %s23, [#allocation3], 128, 128, 8
    $region5: #{lstm_cell.1} parent=1 // pred_fallthru
      _
    // Predicated region
    $region6: #{lstm_cell.1} parent=1 // pred_check
      _
    $region7: #{lstm_cell.1} parent=1 // pred_check_branch
      %30 = sbr.rel (0) target = $region9
    $region8: #{lstm_cell.1} parent=1 // pred_region
      %s32 = ssub.s32 512, 512
      %33 = vsyncadd [#allocation6], %s32
      %s34 = sshll.u32 [#allocation5], 4
      %s35 = int_to_ptr.vmem [resolvable:$true] %s34
      %40 = dma.hbm_to_vmem [thread:$0]  %s1, 512, %s35, [#allocation6], 256, 256, 16
    $region9: #{lstm_cell.1} parent=1 // pred_fallthru
      _
    // Predicated region
    $region10: #{lstm_cell.1} parent=1 // pred_check
      _
    $region11: #{lstm_cell.1} parent=1 // pred_check_branch
      %42 = sbr.rel (0) target = $region13
    $region12: #{lstm_cell.1} parent=1 // pred_region
      %s44 = ssub.s32 512, 512
      %45 = vsyncadd [#allocation6], %s44
      %s46 = sshll.u32 [#allocation7], 4
      %s47 = int_to_ptr.vmem [resolvable:$true] %s46
      %52 = dma.hbm_to_vmem [thread:$0]  %s2, 512, %s47, [#allocation6], 256, 256, 16
    $region13: #{lstm_cell.1} parent=1 // pred_fallthru
      _
    // Predicated region
    $region14: #{lstm_cell.1} parent=1 // pred_check
      _
    $region15: #{lstm_cell.1} parent=1 // pred_check_branch
      %54 = sbr.rel (0) target = $region17
    $region16: #{lstm_cell.1} parent=1 // pred_region
      %s56 = ssub.s32 24576, 24576
      %57 = vsyncadd [#allocation9], %s56
      %s58 = sshll.u32 [#allocation8], 4
      %s59 = int_to_ptr.vmem [resolvable:$true] %s58
      %64 = dma.hbm_to_vmem [thread:$0]  %s3, 24576, %s59, [#allocation9], 512, 512, 32
    $region17: #{lstm_cell.1} parent=1 // pred_fallthru
      _
    // Predicated region
    $region18: #{lstm_cell.1} parent=1 // pred_check
      _
    $region19: #{lstm_cell.1} parent=1 // pred_check_branch
      %66 = sbr.rel (0) target = $region21
    $region20: #{lstm_cell.1} parent=1 // pred_region
      _
    $region21: #{lstm_cell.1} parent=1 // pred_fallthru
      _
    // Predicated region
    $region22: #{lstm_cell.1} parent=1 // pred_check
      _
    $region23: #{lstm_cell.1} parent=1 // pred_check_branch
      %68 = sbr.rel (0) target = $region25
    $region24: #{lstm_cell.1} parent=1 // pred_region
      %69 = dma.done [#allocation3], 256
    $region25: #{lstm_cell.1} parent=1 // pred_fallthru
      _
    // Predicated region
    $region26: #{lstm_cell.1} parent=1 // pred_check
      _
    $region27: #{lstm_cell.1} parent=1 // pred_check_branch
      %71 = sbr.rel (0) target = $region29
    $region28: #{lstm_cell.1} parent=1 // pred_region
      %72 = dma.done [#allocation6], 512
    $region29: #{lstm_cell.1} parent=1 // pred_fallthru
      _
    // Predicated region
    $region30: #{lstm_cell.1} parent=1 // pred_check
      _
    $region31: #{lstm_cell.1} parent=1 // pred_check_branch
      %74 = sbr.rel (0) target = $region33
    $region32: #{lstm_cell.1} parent=1 // pred_region
      %75 = dma.done [#allocation6], 512
    $region33: #{lstm_cell.1} parent=1 // pred_fallthru
      _
    // Predicated region
    $region34: #{lstm_cell.1} parent=1 // pred_check
      _
    $region35: #{lstm_cell.1} parent=1 // pred_check_branch
      %77 = sbr.rel (0) target = $region37
    $region36: #{lstm_cell.1} parent=1 // pred_region
      %78 = dma.done [#allocation9], 24576
    $region37: #{lstm_cell.1} parent=1 // pred_fallthru
      _
    %v80 = vld [vmem:[#allocation2] sm:$0xff]
    %v81 = vld [vmem:[#allocation2 + $0x8] sm:$0xff]
    %v82 = vpack.c.bf16 %v81, %v80
    %v83 = vld [vmem:[#allocation5] sm:$0xff]
    %v84 = vld [vmem:[#allocation5 + $0x8] sm:$0xff]
    %v85 = vld [vmem:[#allocation5 + $0x10] sm:$0xff]
    %v86 = vld [vmem:[#allocation5 + $0x18] sm:$0xff]
    %v87 = vpack.c.bf16 %v85, %v83
    %v88 = vpack.c.bf16 %v86, %v84
    %v89 = vld [vmem:[#allocation8] sm:$0xff]
    %v90 = vld [vmem:[#allocation8 + $0x8] sm:$0xff]
    %v91 = vld [vmem:[#allocation8 + $0x10] sm:$0xff]
    %v92 = vld [vmem:[#allocation8 + $0x18] sm:$0xff]
    %v93 = vld [vmem:[#allocation8 + $0x20] sm:$0xff]
    %v94 = vld [vmem:[#allocation8 + $0x28] sm:$0xff]
    %v95 = vld [vmem:[#allocation8 + $0x30] sm:$0xff]
    %v96 = vld [vmem:[#allocation8 + $0x38] sm:$0xff]
    %v97 = vld [vmem:[#allocation8 + $0x40] sm:$0xff]
    %v98 = vld [vmem:[#allocation8 + $0x48] sm:$0xff]
    %v99 = vld [vmem:[#allocation8 + $0x50] sm:$0xff]
    %v100 = vld [vmem:[#allocation8 + $0x58] sm:$0xff]
    %v101 = vld [vmem:[#allocation8 + $0x60] sm:$0xff]
    %v102 = vld [vmem:[#allocation8 + $0x68] sm:$0xff]
    %v103 = vld [vmem:[#allocation8 + $0x70] sm:$0xff]
    %v104 = vld [vmem:[#allocation8 + $0x78] sm:$0xff]
    %v105 = vld [vmem:[#allocation8 + $0x80] sm:$0xff]
    %v106 = vld [vmem:[#allocation8 + $0x88] sm:$0xff]
    %v107 = vld [vmem:[#allocation8 + $0x90] sm:$0xff]
    %v108 = vld [vmem:[#allocation8 + $0x98] sm:$0xff]
    %v109 = vld [vmem:[#allocation8 + $0xa0] sm:$0xff]
    %v110 = vld [vmem:[#allocation8 + $0xa8] sm:$0xff]
    %v111 = vld [vmem:[#allocation8 + $0xb0] sm:$0xff]
    %v112 = vld [vmem:[#allocation8 + $0xb8] sm:$0xff]
    %v113 = vld [vmem:[#allocation8 + $0xc0] sm:$0xff]
    %v114 = vld [vmem:[#allocation8 + $0xc8] sm:$0xff]
    %v115 = vld [vmem:[#allocation8 + $0xd0] sm:$0xff]
    %v116 = vld [vmem:[#allocation8 + $0xd8] sm:$0xff]
    %v117 = vld [vmem:[#allocation8 + $0xe0] sm:$0xff]
    %v118 = vld [vmem:[#allocation8 + $0xe8] sm:$0xff]
    %v119 = vld [vmem:[#allocation8 + $0xf0] sm:$0xff]
    %v120 = vld [vmem:[#allocation8 + $0xf8] sm:$0xff]
    %v121 = vld [vmem:[#allocation8 + $0x100] sm:$0xff]
    %v122 = vld [vmem:[#allocation8 + $0x108] sm:$0xff]
    %v123 = vld [vmem:[#allocation8 + $0x110] sm:$0xff]
    %v124 = vld [vmem:[#allocation8 + $0x118] sm:$0xff]
    %v125 = vld [vmem:[#allocation8 + $0x120] sm:$0xff]
    %v126 = vld [vmem:[#allocation8 + $0x128] sm:$0xff]
    %v127 = vld [vmem:[#allocation8 + $0x130] sm:$0xff]
    %v128 = vld [vmem:[#allocation8 + $0x138] sm:$0xff]
    %v129 = vld [vmem:[#allocation8 + $0x140] sm:$0xff]
    %v130 = vld [vmem:[#allocation8 + $0x148] sm:$0xff]
    %v131 = vld [vmem:[#allocation8 + $0x150] sm:$0xff]
    %v132 = vld [vmem:[#allocation8 + $0x158] sm:$0xff]
    %v133 = vld [vmem:[#allocation8 + $0x160] sm:$0xff]
    %v134 = vld [vmem:[#allocation8 + $0x168] sm:$0xff]
    %v135 = vld [vmem:[#allocation8 + $0x170] sm:$0xff]
    %v136 = vld [vmem:[#allocation8 + $0x178] sm:$0xff]
    %v137 = vld [vmem:[#allocation8 + $0x180] sm:$0xff]
    %v138 = vld [vmem:[#allocation8 + $0x188] sm:$0xff]
    %v139 = vld [vmem:[#allocation8 + $0x190] sm:$0xff]
    %v140 = vld [vmem:[#allocation8 + $0x198] sm:$0xff]
    %v141 = vld [vmem:[#allocation8 + $0x1a0] sm:$0xff]
    %v142 = vld [vmem:[#allocation8 + $0x1a8] sm:$0xff]
    %v143 = vld [vmem:[#allocation8 + $0x1b0] sm:$0xff]
    %v144 = vld [vmem:[#allocation8 + $0x1b8] sm:$0xff]
    %v145 = vld [vmem:[#allocation8 + $0x1c0] sm:$0xff]
    %v146 = vld [vmem:[#allocation8 + $0x1c8] sm:$0xff]
    %v147 = vld [vmem:[#allocation8 + $0x1d0] sm:$0xff]
    %v148 = vld [vmem:[#allocation8 + $0x1d8] sm:$0xff]
    %v149 = vld [vmem:[#allocation8 + $0x1e0] sm:$0xff]
    %v150 = vld [vmem:[#allocation8 + $0x1e8] sm:$0xff]
    %v151 = vld [vmem:[#allocation8 + $0x1f0] sm:$0xff]
    %v152 = vld [vmem:[#allocation8 + $0x1f8] sm:$0xff]
    %v153 = vld [vmem:[#allocation8 + $0x200] sm:$0xff]
    %v154 = vld [vmem:[#allocation8 + $0x208] sm:$0xff]
    %v155 = vld [vmem:[#allocation8 + $0x210] sm:$0xff]
    %v156 = vld [vmem:[#allocation8 + $0x218] sm:$0xff]
    %v157 = vld [vmem:[#allocation8 + $0x220] sm:$0xff]
    %v158 = vld [vmem:[#allocation8 + $0x228] sm:$0xff]
    %v159 = vld [vmem:[#allocation8 + $0x230] sm:$0xff]
    %v160 = vld [vmem:[#allocation8 + $0x238] sm:$0xff]
    %v161 = vld [vmem:[#allocation8 + $0x240] sm:$0xff]
    %v162 = vld [vmem:[#allocation8 + $0x248] sm:$0xff]
    %v163 = vld [vmem:[#allocation8 + $0x250] sm:$0xff]
    %v164 = vld [vmem:[#allocation8 + $0x258] sm:$0xff]
    %v165 = vld [vmem:[#allocation8 + $0x260] sm:$0xff]
    %v166 = vld [vmem:[#allocation8 + $0x268] sm:$0xff]
    %v167 = vld [vmem:[#allocation8 + $0x270] sm:$0xff]
    %v168 = vld [vmem:[#allocation8 + $0x278] sm:$0xff]
    %v169 = vld [vmem:[#allocation8 + $0x280] sm:$0xff]
    %v170 = vld [vmem:[#allocation8 + $0x288] sm:$0xff]
    %v171 = vld [vmem:[#allocation8 + $0x290] sm:$0xff]
    %v172 = vld [vmem:[#allocation8 + $0x298] sm:$0xff]
    %v173 = vld [vmem:[#allocation8 + $0x2a0] sm:$0xff]
    %v174 = vld [vmem:[#allocation8 + $0x2a8] sm:$0xff]
    %v175 = vld [vmem:[#allocation8 + $0x2b0] sm:$0xff]
    %v176 = vld [vmem:[#allocation8 + $0x2b8] sm:$0xff]
    %v177 = vld [vmem:[#allocation8 + $0x2c0] sm:$0xff]
    %v178 = vld [vmem:[#allocation8 + $0x2c8] sm:$0xff]
    %v179 = vld [vmem:[#allocation8 + $0x2d0] sm:$0xff]
    %v180 = vld [vmem:[#allocation8 + $0x2d8] sm:$0xff]
    %v181 = vld [vmem:[#allocation8 + $0x2e0] sm:$0xff]
    %v182 = vld [vmem:[#allocation8 + $0x2e8] sm:$0xff]
    %v183 = vld [vmem:[#allocation8 + $0x2f0] sm:$0xff]
    %v184 = vld [vmem:[#allocation8 + $0x2f8] sm:$0xff]
    %v185 = vld [vmem:[#allocation8 + $0x300] sm:$0xff]
    %v186 = vld [vmem:[#allocation8 + $0x308] sm:$0xff]
    %v187 = vld [vmem:[#allocation8 + $0x310] sm:$0xff]
    %v188 = vld [vmem:[#allocation8 + $0x318] sm:$0xff]
    %v189 = vld [vmem:[#allocation8 + $0x320] sm:$0xff]
    %v190 = vld [vmem:[#allocation8 + $0x328] sm:$0xff]
    %v191 = vld [vmem:[#allocation8 + $0x330] sm:$0xff]
    %v192 = vld [vmem:[#allocation8 + $0x338] sm:$0xff]
    %v193 = vld [vmem:[#allocation8 + $0x340] sm:$0xff]
    %v194 = vld [vmem:[#allocation8 + $0x348] sm:$0xff]
    %v195 = vld [vmem:[#allocation8 + $0x350] sm:$0xff]
    %v196 = vld [vmem:[#allocation8 + $0x358] sm:$0xff]
    %v197 = vld [vmem:[#allocation8 + $0x360] sm:$0xff]
    %v198 = vld [vmem:[#allocation8 + $0x368] sm:$0xff]
    %v199 = vld [vmem:[#allocation8 + $0x370] sm:$0xff]
    %v200 = vld [vmem:[#allocation8 + $0x378] sm:$0xff]
    %v201 = vld [vmem:[#allocation8 + $0x380] sm:$0xff]
    %v202 = vld [vmem:[#allocation8 + $0x388] sm:$0xff]
    %v203 = vld [vmem:[#allocation8 + $0x390] sm:$0xff]
    %v204 = vld [vmem:[#allocation8 + $0x398] sm:$0xff]
    %v205 = vld [vmem:[#allocation8 + $0x3a0] sm:$0xff]
    %v206 = vld [vmem:[#allocation8 + $0x3a8] sm:$0xff]
    %v207 = vld [vmem:[#allocation8 + $0x3b0] sm:$0xff]
    %v208 = vld [vmem:[#allocation8 + $0x3b8] sm:$0xff]
    %v209 = vld [vmem:[#allocation8 + $0x3c0] sm:$0xff]
    %v210 = vld [vmem:[#allocation8 + $0x3c8] sm:$0xff]
    %v211 = vld [vmem:[#allocation8 + $0x3d0] sm:$0xff]
    %v212 = vld [vmem:[#allocation8 + $0x3d8] sm:$0xff]
    %v213 = vld [vmem:[#allocation8 + $0x3e0] sm:$0xff]
    %v214 = vld [vmem:[#allocation8 + $0x3e8] sm:$0xff]
    %v215 = vld [vmem:[#allocation8 + $0x3f0] sm:$0xff]
    %v216 = vld [vmem:[#allocation8 + $0x3f8] sm:$0xff]
    %v217 = vld [vmem:[#allocation8 + $0x400] sm:$0xff]
    %v218 = vld [vmem:[#allocation8 + $0x408] sm:$0xff]
    %v219 = vld [vmem:[#allocation8 + $0x410] sm:$0xff]
    %v220 = vld [vmem:[#allocation8 + $0x418] sm:$0xff]
    %v221 = vld [vmem:[#allocation8 + $0x420] sm:$0xff]
    %v222 = vld [vmem:[#allocation8 + $0x428] sm:$0xff]
    %v223 = vld [vmem:[#allocation8 + $0x430] sm:$0xff]
    %v224 = vld [vmem:[#allocation8 + $0x438] sm:$0xff]
    %v225 = vld [vmem:[#allocation8 + $0x440] sm:$0xff]
    %v226 = vld [vmem:[#allocation8 + $0x448] sm:$0xff]
    %v227 = vld [vmem:[#allocation8 + $0x450] sm:$0xff]
    %v228 = vld [vmem:[#allocation8 + $0x458] sm:$0xff]
    %v229 = vld [vmem:[#allocation8 + $0x460] sm:$0xff]
    %v230 = vld [vmem:[#allocation8 + $0x468] sm:$0xff]
    %v231 = vld [vmem:[#allocation8 + $0x470] sm:$0xff]
    %v232 = vld [vmem:[#allocation8 + $0x478] sm:$0xff]
    %v233 = vld [vmem:[#allocation8 + $0x480] sm:$0xff]
    %v234 = vld [vmem:[#allocation8 + $0x488] sm:$0xff]
    %v235 = vld [vmem:[#allocation8 + $0x490] sm:$0xff]
    %v236 = vld [vmem:[#allocation8 + $0x498] sm:$0xff]
    %v237 = vld [vmem:[#allocation8 + $0x4a0] sm:$0xff]
    %v238 = vld [vmem:[#allocation8 + $0x4a8] sm:$0xff]
    %v239 = vld [vmem:[#allocation8 + $0x4b0] sm:$0xff]
    %v240 = vld [vmem:[#allocation8 + $0x4b8] sm:$0xff]
    %v241 = vld [vmem:[#allocation8 + $0x4c0] sm:$0xff]
    %v242 = vld [vmem:[#allocation8 + $0x4c8] sm:$0xff]
    %v243 = vld [vmem:[#allocation8 + $0x4d0] sm:$0xff]
    %v244 = vld [vmem:[#allocation8 + $0x4d8] sm:$0xff]
    %v245 = vld [vmem:[#allocation8 + $0x4e0] sm:$0xff]
    %v246 = vld [vmem:[#allocation8 + $0x4e8] sm:$0xff]
    %v247 = vld [vmem:[#allocation8 + $0x4f0] sm:$0xff]
    %v248 = vld [vmem:[#allocation8 + $0x4f8] sm:$0xff]
    %v249 = vld [vmem:[#allocation8 + $0x500] sm:$0xff]
    %v250 = vld [vmem:[#allocation8 + $0x508] sm:$0xff]
    %v251 = vld [vmem:[#allocation8 + $0x510] sm:$0xff]
    %v252 = vld [vmem:[#allocation8 + $0x518] sm:$0xff]
    %v253 = vld [vmem:[#allocation8 + $0x520] sm:$0xff]
    %v254 = vld [vmem:[#allocation8 + $0x528] sm:$0xff]
    %v255 = vld [vmem:[#allocation8 + $0x530] sm:$0xff]
    %v256 = vld [vmem:[#allocation8 + $0x538] sm:$0xff]
    %v257 = vld [vmem:[#allocation8 + $0x540] sm:$0xff]
    %v258 = vld [vmem:[#allocation8 + $0x548] sm:$0xff]
    %v259 = vld [vmem:[#allocation8 + $0x550] sm:$0xff]
    %v260 = vld [vmem:[#allocation8 + $0x558] sm:$0xff]
    %v261 = vld [vmem:[#allocation8 + $0x560] sm:$0xff]
    %v262 = vld [vmem:[#allocation8 + $0x568] sm:$0xff]
    %v263 = vld [vmem:[#allocation8 + $0x570] sm:$0xff]
    %v264 = vld [vmem:[#allocation8 + $0x578] sm:$0xff]
    %v265 = vld [vmem:[#allocation8 + $0x580] sm:$0xff]
    %v266 = vld [vmem:[#allocation8 + $0x588] sm:$0xff]
    %v267 = vld [vmem:[#allocation8 + $0x590] sm:$0xff]
    %v268 = vld [vmem:[#allocation8 + $0x598] sm:$0xff]
    %v269 = vld [vmem:[#allocation8 + $0x5a0] sm:$0xff]
    %v270 = vld [vmem:[#allocation8 + $0x5a8] sm:$0xff]
    %v271 = vld [vmem:[#allocation8 + $0x5b0] sm:$0xff]
    %v272 = vld [vmem:[#allocation8 + $0x5b8] sm:$0xff]
    %v273 = vld [vmem:[#allocation8 + $0x5c0] sm:$0xff]
    %v274 = vld [vmem:[#allocation8 + $0x5c8] sm:$0xff]
    %v275 = vld [vmem:[#allocation8 + $0x5d0] sm:$0xff]
    %v276 = vld [vmem:[#allocation8 + $0x5d8] sm:$0xff]
    %v277 = vld [vmem:[#allocation8 + $0x5e0] sm:$0xff]
    %v278 = vld [vmem:[#allocation8 + $0x5e8] sm:$0xff]
    %v279 = vld [vmem:[#allocation8 + $0x5f0] sm:$0xff]
    %v280 = vld [vmem:[#allocation8 + $0x5f8] sm:$0xff]
    %v409 = vunpack.c.l.b16 %v153
    %v410 = vunpack.c.h.b16 %v153
    %v411 = vunpack.c.l.b16 %v154
    %v412 = vunpack.c.h.b16 %v154
    %v413 = vunpack.c.l.b16 %v155
    %v414 = vunpack.c.h.b16 %v155
    %v415 = vunpack.c.l.b16 %v156
    %v416 = vunpack.c.h.b16 %v156
    %v417 = vunpack.c.l.b16 %v157
    %v418 = vunpack.c.h.b16 %v157
    %v419 = vunpack.c.l.b16 %v158
    %v420 = vunpack.c.h.b16 %v158
    %v421 = vunpack.c.l.b16 %v159
    %v422 = vunpack.c.h.b16 %v159
    %v423 = vunpack.c.l.b16 %v160
    %v424 = vunpack.c.h.b16 %v160
    %v425 = vunpack.c.l.b16 %v161
    %v426 = vunpack.c.h.b16 %v161
    %v427 = vunpack.c.l.b16 %v162
    %v428 = vunpack.c.h.b16 %v162
    %v429 = vunpack.c.l.b16 %v163
    %v430 = vunpack.c.h.b16 %v163
    %v431 = vunpack.c.l.b16 %v164
    %v432 = vunpack.c.h.b16 %v164
    %v433 = vunpack.c.l.b16 %v165
    %v434 = vunpack.c.h.b16 %v165
    %v435 = vunpack.c.l.b16 %v166
    %v436 = vunpack.c.h.b16 %v166
    %v437 = vunpack.c.l.b16 %v167
    %v438 = vunpack.c.h.b16 %v167
    %v439 = vunpack.c.l.b16 %v168
    %v440 = vunpack.c.h.b16 %v168
    %v441 = vunpack.c.l.b16 %v169
    %v442 = vunpack.c.h.b16 %v169
    %v443 = vunpack.c.l.b16 %v170
    %v444 = vunpack.c.h.b16 %v170
    %v445 = vunpack.c.l.b16 %v171
    %v446 = vunpack.c.h.b16 %v171
    %v447 = vunpack.c.l.b16 %v172
    %v448 = vunpack.c.h.b16 %v172
    %v449 = vunpack.c.l.b16 %v173
    %v450 = vunpack.c.h.b16 %v173
    %v451 = vunpack.c.l.b16 %v174
    %v452 = vunpack.c.h.b16 %v174
    %v453 = vunpack.c.l.b16 %v175
    %v454 = vunpack.c.h.b16 %v175
    %v455 = vunpack.c.l.b16 %v176
    %v456 = vunpack.c.h.b16 %v176
    %v457 = vunpack.c.l.b16 %v177
    %v458 = vunpack.c.h.b16 %v177
    %v459 = vunpack.c.l.b16 %v178
    %v460 = vunpack.c.h.b16 %v178
    %v461 = vunpack.c.l.b16 %v179
    %v462 = vunpack.c.h.b16 %v179
    %v463 = vunpack.c.l.b16 %v180
    %v464 = vunpack.c.h.b16 %v180
    %v465 = vunpack.c.l.b16 %v181
    %v466 = vunpack.c.h.b16 %v181
    %v467 = vunpack.c.l.b16 %v182
    %v468 = vunpack.c.h.b16 %v182
    %v469 = vunpack.c.l.b16 %v183
    %v470 = vunpack.c.h.b16 %v183
    %v471 = vunpack.c.l.b16 %v184
    %v472 = vunpack.c.h.b16 %v184
    %v473 = vunpack.c.l.b16 %v185
    %v474 = vunpack.c.h.b16 %v185
    %v475 = vunpack.c.l.b16 %v186
    %v476 = vunpack.c.h.b16 %v186
    %v477 = vunpack.c.l.b16 %v187
    %v478 = vunpack.c.h.b16 %v187
    %v479 = vunpack.c.l.b16 %v188
    %v480 = vunpack.c.h.b16 %v188
    %v481 = vunpack.c.l.b16 %v189
    %v482 = vunpack.c.h.b16 %v189
    %v483 = vunpack.c.l.b16 %v190
    %v484 = vunpack.c.h.b16 %v190
    %v485 = vunpack.c.l.b16 %v191
    %v486 = vunpack.c.h.b16 %v191
    %v487 = vunpack.c.l.b16 %v192
    %v488 = vunpack.c.h.b16 %v192
    %v489 = vunpack.c.l.b16 %v193
    %v490 = vunpack.c.h.b16 %v193
    %v491 = vunpack.c.l.b16 %v194
    %v492 = vunpack.c.h.b16 %v194
    %v493 = vunpack.c.l.b16 %v195
    %v494 = vunpack.c.h.b16 %v195
    %v495 = vunpack.c.l.b16 %v196
    %v496 = vunpack.c.h.b16 %v196
    %v497 = vunpack.c.l.b16 %v197
    %v498 = vunpack.c.h.b16 %v197
    %v499 = vunpack.c.l.b16 %v198
    %v500 = vunpack.c.h.b16 %v198
    %v501 = vunpack.c.l.b16 %v199
    %v502 = vunpack.c.h.b16 %v199
    %v503 = vunpack.c.l.b16 %v200
    %v504 = vunpack.c.h.b16 %v200
    %v505 = vunpack.c.l.b16 %v201
    %v506 = vunpack.c.h.b16 %v201
    %v507 = vunpack.c.l.b16 %v202
    %v508 = vunpack.c.h.b16 %v202
    %v509 = vunpack.c.l.b16 %v203
    %v510 = vunpack.c.h.b16 %v203
    %v511 = vunpack.c.l.b16 %v204
    %v512 = vunpack.c.h.b16 %v204
    %v513 = vunpack.c.l.b16 %v205
    %v514 = vunpack.c.h.b16 %v205
    %v515 = vunpack.c.l.b16 %v206
    %v516 = vunpack.c.h.b16 %v206
    %v517 = vunpack.c.l.b16 %v207
    %v518 = vunpack.c.h.b16 %v207
    %v519 = vunpack.c.l.b16 %v208
    %v520 = vunpack.c.h.b16 %v208
    %v521 = vunpack.c.l.b16 %v209
    %v522 = vunpack.c.h.b16 %v209
    %v523 = vunpack.c.l.b16 %v210
    %v524 = vunpack.c.h.b16 %v210
    %v525 = vunpack.c.l.b16 %v211
    %v526 = vunpack.c.h.b16 %v211
    %v527 = vunpack.c.l.b16 %v212
    %v528 = vunpack.c.h.b16 %v212
    %v529 = vunpack.c.l.b16 %v213
    %v530 = vunpack.c.h.b16 %v213
    %v531 = vunpack.c.l.b16 %v214
    %v532 = vunpack.c.h.b16 %v214
    %v533 = vunpack.c.l.b16 %v215
    %v534 = vunpack.c.h.b16 %v215
    %v535 = vunpack.c.l.b16 %v216
    %v536 = vunpack.c.h.b16 %v216
    %v537 = vunpack.c.l.b16 %v217
    %v538 = vunpack.c.h.b16 %v217
    %v539 = vunpack.c.l.b16 %v218
    %v540 = vunpack.c.h.b16 %v218
    %v541 = vunpack.c.l.b16 %v219
    %v542 = vunpack.c.h.b16 %v219
    %v543 = vunpack.c.l.b16 %v220
    %v544 = vunpack.c.h.b16 %v220
    %v545 = vunpack.c.l.b16 %v221
    %v546 = vunpack.c.h.b16 %v221
    %v547 = vunpack.c.l.b16 %v222
    %v548 = vunpack.c.h.b16 %v222
    %v549 = vunpack.c.l.b16 %v223
    %v550 = vunpack.c.h.b16 %v223
    %v551 = vunpack.c.l.b16 %v224
    %v552 = vunpack.c.h.b16 %v224
    %v553 = vunpack.c.l.b16 %v225
    %v554 = vunpack.c.h.b16 %v225
    %v555 = vunpack.c.l.b16 %v226
    %v556 = vunpack.c.h.b16 %v226
    %v557 = vunpack.c.l.b16 %v227
    %v558 = vunpack.c.h.b16 %v227
    %v559 = vunpack.c.l.b16 %v228
    %v560 = vunpack.c.h.b16 %v228
    %v561 = vunpack.c.l.b16 %v229
    %v562 = vunpack.c.h.b16 %v229
    %v563 = vunpack.c.l.b16 %v230
    %v564 = vunpack.c.h.b16 %v230
    %v565 = vunpack.c.l.b16 %v231
    %v566 = vunpack.c.h.b16 %v231
    %v567 = vunpack.c.l.b16 %v232
    %v568 = vunpack.c.h.b16 %v232
    %v569 = vunpack.c.l.b16 %v233
    %v570 = vunpack.c.h.b16 %v233
    %v571 = vunpack.c.l.b16 %v234
    %v572 = vunpack.c.h.b16 %v234
    %v573 = vunpack.c.l.b16 %v235
    %v574 = vunpack.c.h.b16 %v235
    %v575 = vunpack.c.l.b16 %v236
    %v576 = vunpack.c.h.b16 %v236
    %v577 = vunpack.c.l.b16 %v237
    %v578 = vunpack.c.h.b16 %v237
    %v579 = vunpack.c.l.b16 %v238
    %v580 = vunpack.c.h.b16 %v238
    %v581 = vunpack.c.l.b16 %v239
    %v582 = vunpack.c.h.b16 %v239
    %v583 = vunpack.c.l.b16 %v240
    %v584 = vunpack.c.h.b16 %v240
    %v585 = vunpack.c.l.b16 %v241
    %v586 = vunpack.c.h.b16 %v241
    %v587 = vunpack.c.l.b16 %v242
    %v588 = vunpack.c.h.b16 %v242
    %v589 = vunpack.c.l.b16 %v243
    %v590 = vunpack.c.h.b16 %v243
    %v591 = vunpack.c.l.b16 %v244
    %v592 = vunpack.c.h.b16 %v244
    %v593 = vunpack.c.l.b16 %v245
    %v594 = vunpack.c.h.b16 %v245
    %v595 = vunpack.c.l.b16 %v246
    %v596 = vunpack.c.h.b16 %v246
    %v597 = vunpack.c.l.b16 %v247
    %v598 = vunpack.c.h.b16 %v247
    %v599 = vunpack.c.l.b16 %v248
    %v600 = vunpack.c.h.b16 %v248
    %v601 = vunpack.c.l.b16 %v249
    %v602 = vunpack.c.h.b16 %v249
    %v603 = vunpack.c.l.b16 %v250
    %v604 = vunpack.c.h.b16 %v250
    %v605 = vunpack.c.l.b16 %v251
    %v606 = vunpack.c.h.b16 %v251
    %v607 = vunpack.c.l.b16 %v252
    %v608 = vunpack.c.h.b16 %v252
    %v609 = vunpack.c.l.b16 %v253
    %v610 = vunpack.c.h.b16 %v253
    %v611 = vunpack.c.l.b16 %v254
    %v612 = vunpack.c.h.b16 %v254
    %v613 = vunpack.c.l.b16 %v255
    %v614 = vunpack.c.h.b16 %v255
    %v615 = vunpack.c.l.b16 %v256
    %v616 = vunpack.c.h.b16 %v256
    %v617 = vunpack.c.l.b16 %v257
    %v618 = vunpack.c.h.b16 %v257
    %v619 = vunpack.c.l.b16 %v258
    %v620 = vunpack.c.h.b16 %v258
    %v621 = vunpack.c.l.b16 %v259
    %v622 = vunpack.c.h.b16 %v259
    %v623 = vunpack.c.l.b16 %v260
    %v624 = vunpack.c.h.b16 %v260
    %v625 = vunpack.c.l.b16 %v261
    %v626 = vunpack.c.h.b16 %v261
    %v627 = vunpack.c.l.b16 %v262
    %v628 = vunpack.c.h.b16 %v262
    %v629 = vunpack.c.l.b16 %v263
    %v630 = vunpack.c.h.b16 %v263
    %v631 = vunpack.c.l.b16 %v264
    %v632 = vunpack.c.h.b16 %v264
    %v633 = vunpack.c.l.b16 %v265
    %v634 = vunpack.c.h.b16 %v265
    %v635 = vunpack.c.l.b16 %v266
    %v636 = vunpack.c.h.b16 %v266
    %v637 = vunpack.c.l.b16 %v267
    %v638 = vunpack.c.h.b16 %v267
    %v639 = vunpack.c.l.b16 %v268
    %v640 = vunpack.c.h.b16 %v268
    %v641 = vunpack.c.l.b16 %v269
    %v642 = vunpack.c.h.b16 %v269
    %v643 = vunpack.c.l.b16 %v270
    %v644 = vunpack.c.h.b16 %v270
    %v645 = vunpack.c.l.b16 %v271
    %v646 = vunpack.c.h.b16 %v271
    %v647 = vunpack.c.l.b16 %v272
    %v648 = vunpack.c.h.b16 %v272
    %v649 = vunpack.c.l.b16 %v273
    %v650 = vunpack.c.h.b16 %v273
    %v651 = vunpack.c.l.b16 %v274
    %v652 = vunpack.c.h.b16 %v274
    %v653 = vunpack.c.l.b16 %v275
    %v654 = vunpack.c.h.b16 %v275
    %v655 = vunpack.c.l.b16 %v276
    %v656 = vunpack.c.h.b16 %v276
    %v657 = vunpack.c.l.b16 %v277
    %v658 = vunpack.c.h.b16 %v277
    %v659 = vunpack.c.l.b16 %v278
    %v660 = vunpack.c.h.b16 %v278
    %v661 = vunpack.c.l.b16 %v279
    %v662 = vunpack.c.h.b16 %v279
    %v663 = vunpack.c.l.b16 %v280
    %v664 = vunpack.c.h.b16 %v280
    %v665 = vpack.c.b16 %v417, %v409
    %v666 = vpack.c.b16 %v418, %v410
    %v667 = vpack.c.b16 %v419, %v411
    %v668 = vpack.c.b16 %v420, %v412
    %v669 = vpack.c.b16 %v421, %v413
    %v670 = vpack.c.b16 %v422, %v414
    %v671 = vpack.c.b16 %v423, %v415
    %v672 = vpack.c.b16 %v424, %v416
    %v673 = vpack.c.b16 %v433, %v425
    %v674 = vpack.c.b16 %v434, %v426
    %v675 = vpack.c.b16 %v435, %v427
    %v676 = vpack.c.b16 %v436, %v428
    %v677 = vpack.c.b16 %v437, %v429
    %v678 = vpack.c.b16 %v438, %v430
    %v679 = vpack.c.b16 %v439, %v431
    %v680 = vpack.c.b16 %v440, %v432
    %v681 = vpack.c.b16 %v449, %v441
    %v682 = vpack.c.b16 %v450, %v442
    %v683 = vpack.c.b16 %v451, %v443
    %v684 = vpack.c.b16 %v452, %v444
    %v685 = vpack.c.b16 %v453, %v445
    %v686 = vpack.c.b16 %v454, %v446
    %v687 = vpack.c.b16 %v455, %v447
    %v688 = vpack.c.b16 %v456, %v448
    %v689 = vpack.c.b16 %v465, %v457
    %v690 = vpack.c.b16 %v466, %v458
    %v691 = vpack.c.b16 %v467, %v459
    %v692 = vpack.c.b16 %v468, %v460
    %v693 = vpack.c.b16 %v469, %v461
    %v694 = vpack.c.b16 %v470, %v462
    %v695 = vpack.c.b16 %v471, %v463
    %v696 = vpack.c.b16 %v472, %v464
    %v697 = vpack.c.b16 %v481, %v473
    %v698 = vpack.c.b16 %v482, %v474
    %v699 = vpack.c.b16 %v483, %v475
    %v700 = vpack.c.b16 %v484, %v476
    %v701 = vpack.c.b16 %v485, %v477
    %v702 = vpack.c.b16 %v486, %v478
    %v703 = vpack.c.b16 %v487, %v479
    %v704 = vpack.c.b16 %v488, %v480
    %v705 = vpack.c.b16 %v497, %v489
    %v706 = vpack.c.b16 %v498, %v490
    %v707 = vpack.c.b16 %v499, %v491
    %v708 = vpack.c.b16 %v500, %v492
    %v709 = vpack.c.b16 %v501, %v493
    %v710 = vpack.c.b16 %v502, %v494
    %v711 = vpack.c.b16 %v503, %v495
    %v712 = vpack.c.b16 %v504, %v496
    %v713 = vpack.c.b16 %v513, %v505
    %v714 = vpack.c.b16 %v514, %v506
    %v715 = vpack.c.b16 %v515, %v507
    %v716 = vpack.c.b16 %v516, %v508
    %v717 = vpack.c.b16 %v517, %v509
    %v718 = vpack.c.b16 %v518, %v510
    %v719 = vpack.c.b16 %v519, %v511
    %v720 = vpack.c.b16 %v520, %v512
    %v721 = vpack.c.b16 %v529, %v521
    %v722 = vpack.c.b16 %v530, %v522
    %v723 = vpack.c.b16 %v531, %v523
    %v724 = vpack.c.b16 %v532, %v524
    %v725 = vpack.c.b16 %v533, %v525
    %v726 = vpack.c.b16 %v534, %v526
    %v727 = vpack.c.b16 %v535, %v527
    %v728 = vpack.c.b16 %v536, %v528
    %v729 = vpack.c.b16 %v545, %v537
    %v730 = vpack.c.b16 %v546, %v538
    %v731 = vpack.c.b16 %v547, %v539
    %v732 = vpack.c.b16 %v548, %v540
    %v733 = vpack.c.b16 %v549, %v541
    %v734 = vpack.c.b16 %v550, %v542
    %v735 = vpack.c.b16 %v551, %v543
    %v736 = vpack.c.b16 %v552, %v544
    %v737 = vpack.c.b16 %v561, %v553
    %v738 = vpack.c.b16 %v562, %v554
    %v739 = vpack.c.b16 %v563, %v555
    %v740 = vpack.c.b16 %v564, %v556
    %v741 = vpack.c.b16 %v565, %v557
    %v742 = vpack.c.b16 %v566, %v558
    %v743 = vpack.c.b16 %v567, %v559
    %v744 = vpack.c.b16 %v568, %v560
    %v745 = vpack.c.b16 %v577, %v569
    %v746 = vpack.c.b16 %v578, %v570
    %v747 = vpack.c.b16 %v579, %v571
    %v748 = vpack.c.b16 %v580, %v572
    %v749 = vpack.c.b16 %v581, %v573
    %v750 = vpack.c.b16 %v582, %v574
    %v751 = vpack.c.b16 %v583, %v575
    %v752 = vpack.c.b16 %v584, %v576
    %v753 = vpack.c.b16 %v593, %v585
    %v754 = vpack.c.b16 %v594, %v586
    %v755 = vpack.c.b16 %v595, %v587
    %v756 = vpack.c.b16 %v596, %v588
    %v757 = vpack.c.b16 %v597, %v589
    %v758 = vpack.c.b16 %v598, %v590
    %v759 = vpack.c.b16 %v599, %v591
    %v760 = vpack.c.b16 %v600, %v592
    %v761 = vpack.c.b16 %v609, %v601
    %v762 = vpack.c.b16 %v610, %v602
    %v763 = vpack.c.b16 %v611, %v603
    %v764 = vpack.c.b16 %v612, %v604
    %v765 = vpack.c.b16 %v613, %v605
    %v766 = vpack.c.b16 %v614, %v606
    %v767 = vpack.c.b16 %v615, %v607
    %v768 = vpack.c.b16 %v616, %v608
    %v769 = vpack.c.b16 %v625, %v617
    %v770 = vpack.c.b16 %v626, %v618
    %v771 = vpack.c.b16 %v627, %v619
    %v772 = vpack.c.b16 %v628, %v620
    %v773 = vpack.c.b16 %v629, %v621
    %v774 = vpack.c.b16 %v630, %v622
    %v775 = vpack.c.b16 %v631, %v623
    %v776 = vpack.c.b16 %v632, %v624
    %v777 = vpack.c.b16 %v641, %v633
    %v778 = vpack.c.b16 %v642, %v634
    %v779 = vpack.c.b16 %v643, %v635
    %v780 = vpack.c.b16 %v644, %v636
    %v781 = vpack.c.b16 %v645, %v637
    %v782 = vpack.c.b16 %v646, %v638
    %v783 = vpack.c.b16 %v647, %v639
    %v784 = vpack.c.b16 %v648, %v640
    %v785 = vpack.c.b16 %v657, %v649
    %v786 = vpack.c.b16 %v658, %v650
    %v787 = vpack.c.b16 %v659, %v651
    %v788 = vpack.c.b16 %v660, %v652
    %v789 = vpack.c.b16 %v661, %v653
    %v790 = vpack.c.b16 %v662, %v654
    %v791 = vpack.c.b16 %v663, %v655
    %v792 = vpack.c.b16 %v664, %v656
    %921 = vmatprep.subr.bf16.mxu0 %v666
    %922 = vmatpush1.bf16.msra.mxu0 %v665
    %923 = vmatprep.subr.bf16.mxu0 %v674
    %924 = vmatpush1.bf16.msra.mxu0 %v673
    %925 = vmatprep.subr.bf16.mxu0 %v682
    %926 = vmatpush1.bf16.msra.mxu0 %v681
    %927 = vmatprep.subr.bf16.mxu0 %v690
    %928 = vmatpush1.bf16.msra.mxu0 %v689
    %929 = vmatprep.subr.bf16.mxu0 %v698
    %930 = vmatpush1.bf16.msra.mxu0 %v697
    %931 = vmatprep.subr.bf16.mxu0 %v706
    %932 = vmatpush1.bf16.msra.mxu0 %v705
    %933 = vmatprep.subr.bf16.mxu0 %v714
    %934 = vmatpush1.bf16.msra.mxu0 %v713
    %935 = vmatprep.subr.bf16.mxu0 %v722
    %936 = vmatpush1.bf16.msra.mxu0 %v721
    %937 = vmatprep.subr.bf16.mxu0 %v730
    %938 = vmatpush1.bf16.msra.mxu0 %v729
    %939 = vmatprep.subr.bf16.mxu0 %v738
    %940 = vmatpush1.bf16.msra.mxu0 %v737
    %941 = vmatprep.subr.bf16.mxu0 %v746
    %942 = vmatpush1.bf16.msra.mxu0 %v745
    %943 = vmatprep.subr.bf16.mxu0 %v754
    %944 = vmatpush1.bf16.msra.mxu0 %v753
    %945 = vmatprep.subr.bf16.mxu0 %v762
    %946 = vmatpush1.bf16.msra.mxu0 %v761
    %947 = vmatprep.subr.bf16.mxu0 %v770
    %948 = vmatpush1.bf16.msra.mxu0 %v769
    %949 = vmatprep.subr.bf16.mxu0 %v778
    %950 = vmatpush1.bf16.msra.mxu0 %v777
    %951 = vmatprep.subr.bf16.mxu0 %v786
    %952 = vmatpush1.bf16.msra.mxu0 %v785
    %953 = vmatprep.mubr.bf16.mxu0 %v88
    %954 = vmatmul.mubr.bf16.gmra.mrb[0].mxu0 %v87
    %v955 = vpop.f32.mrb[0].mxu0
    %v956 = vadd.f32 0.0, %v955
    %v957 = vpop.f32.mrb[0].mxu0
    %v958 = vadd.f32 0.0, %v957
    %v959 = vpop.f32.mrb[0].mxu0
    %v960 = vadd.f32 0.0, %v959
    %v961 = vpop.f32.mrb[0].mxu0
    %v962 = vadd.f32 0.0, %v961
    %963 = vdwg.mxu0
    %964 = vmatprep.subr.bf16.mxu0 %v668
    %965 = vmatpush1.bf16.msra.mxu0 %v667
    %966 = vmatprep.subr.bf16.mxu0 %v676
    %967 = vmatpush1.bf16.msra.mxu0 %v675
    %968 = vmatprep.subr.bf16.mxu0 %v684
    %969 = vmatpush1.bf16.msra.mxu0 %v683
    %970 = vmatprep.subr.bf16.mxu0 %v692
    %971 = vmatpush1.bf16.msra.mxu0 %v691
    %972 = vmatprep.subr.bf16.mxu0 %v700
    %973 = vmatpush1.bf16.msra.mxu0 %v699
    %974 = vmatprep.subr.bf16.mxu0 %v708
    %975 = vmatpush1.bf16.msra.mxu0 %v707
    %976 = vmatprep.subr.bf16.mxu0 %v716
    %977 = vmatpush1.bf16.msra.mxu0 %v715
    %978 = vmatprep.subr.bf16.mxu0 %v724
    %979 = vmatpush1.bf16.msra.mxu0 %v723
    %980 = vmatprep.subr.bf16.mxu0 %v732
    %981 = vmatpush1.bf16.msra.mxu0 %v731
    %982 = vmatprep.subr.bf16.mxu0 %v740
    %983 = vmatpush1.bf16.msra.mxu0 %v739
    %984 = vmatprep.subr.bf16.mxu0 %v748
    %985 = vmatpush1.bf16.msra.mxu0 %v747
    %986 = vmatprep.subr.bf16.mxu0 %v756
    %987 = vmatpush1.bf16.msra.mxu0 %v755
    %988 = vmatprep.subr.bf16.mxu0 %v764
    %989 = vmatpush1.bf16.msra.mxu0 %v763
    %990 = vmatprep.subr.bf16.mxu0 %v772
    %991 = vmatpush1.bf16.msra.mxu0 %v771
    %992 = vmatprep.subr.bf16.mxu0 %v780
    %993 = vmatpush1.bf16.msra.mxu0 %v779
    %994 = vmatprep.subr.bf16.mxu0 %v788
    %995 = vmatpush1.bf16.msra.mxu0 %v787
    %996 = vmatprep.mubr.bf16.mxu0 %v88
    %997 = vmatmul.mubr.bf16.gmra.mrb[0].mxu0 %v87
    %v998 = vpop.f32.mrb[0].mxu0
    %v999 = vadd.f32 0.0, %v998
    %v1000 = vpop.f32.mrb[0].mxu0
    %v1001 = vadd.f32 0.0, %v1000
    %v1002 = vpop.f32.mrb[0].mxu0
    %v1003 = vadd.f32 0.0, %v1002
    %v1004 = vpop.f32.mrb[0].mxu0
    %v1005 = vadd.f32 0.0, %v1004
    %1006 = vdwg.mxu0
    %1007 = vmatprep.subr.bf16.mxu0 %v670
    %1008 = vmatpush1.bf16.msra.mxu0 %v669
    %1009 = vmatprep.subr.bf16.mxu0 %v678
    %1010 = vmatpush1.bf16.msra.mxu0 %v677
    %1011 = vmatprep.subr.bf16.mxu0 %v686
    %1012 = vmatpush1.bf16.msra.mxu0 %v685
    %1013 = vmatprep.subr.bf16.mxu0 %v694
    %1014 = vmatpush1.bf16.msra.mxu0 %v693
    %1015 = vmatprep.subr.bf16.mxu0 %v702
    %1016 = vmatpush1.bf16.msra.mxu0 %v701
    %1017 = vmatprep.subr.bf16.mxu0 %v710
    %1018 = vmatpush1.bf16.msra.mxu0 %v709
    %1019 = vmatprep.subr.bf16.mxu0 %v718
    %1020 = vmatpush1.bf16.msra.mxu0 %v717
    %1021 = vmatprep.subr.bf16.mxu0 %v726
    %1022 = vmatpush1.bf16.msra.mxu0 %v725
    %1023 = vmatprep.subr.bf16.mxu0 %v734
    %1024 = vmatpush1.bf16.msra.mxu0 %v733
    %1025 = vmatprep.subr.bf16.mxu0 %v742
    %1026 = vmatpush1.bf16.msra.mxu0 %v741
    %1027 = vmatprep.subr.bf16.mxu0 %v750
    %1028 = vmatpush1.bf16.msra.mxu0 %v749
    %1029 = vmatprep.subr.bf16.mxu0 %v758
    %1030 = vmatpush1.bf16.msra.mxu0 %v757
    %1031 = vmatprep.subr.bf16.mxu0 %v766
    %1032 = vmatpush1.bf16.msra.mxu0 %v765
    %1033 = vmatprep.subr.bf16.mxu0 %v774
    %1034 = vmatpush1.bf16.msra.mxu0 %v773
    %1035 = vmatprep.subr.bf16.mxu0 %v782
    %1036 = vmatpush1.bf16.msra.mxu0 %v781
    %1037 = vmatprep.subr.bf16.mxu0 %v790
    %1038 = vmatpush1.bf16.msra.mxu0 %v789
    %1039 = vmatprep.mubr.bf16.mxu0 %v88
    %1040 = vmatmul.mubr.bf16.gmra.mrb[0].mxu0 %v87
    %v1041 = vpop.f32.mrb[0].mxu0
    %v1042 = vadd.f32 0.0, %v1041
    %v1043 = vpop.f32.mrb[0].mxu0
    %v1044 = vadd.f32 0.0, %v1043
    %v1045 = vpop.f32.mrb[0].mxu0
    %v1046 = vadd.f32 0.0, %v1045
    %v1047 = vpop.f32.mrb[0].mxu0
    %v1048 = vadd.f32 0.0, %v1047
    %1049 = vdwg.mxu0
    %1050 = vmatprep.subr.bf16.mxu0 %v672
    %1051 = vmatpush1.bf16.msra.mxu0 %v671
    %1052 = vmatprep.subr.bf16.mxu0 %v680
    %1053 = vmatpush1.bf16.msra.mxu0 %v679
    %1054 = vmatprep.subr.bf16.mxu0 %v688
    %1055 = vmatpush1.bf16.msra.mxu0 %v687
    %1056 = vmatprep.subr.bf16.mxu0 %v696
    %1057 = vmatpush1.bf16.msra.mxu0 %v695
    %1058 = vmatprep.subr.bf16.mxu0 %v704
    %1059 = vmatpush1.bf16.msra.mxu0 %v703
    %1060 = vmatprep.subr.bf16.mxu0 %v712
    %1061 = vmatpush1.bf16.msra.mxu0 %v711
    %1062 = vmatprep.subr.bf16.mxu0 %v720
    %1063 = vmatpush1.bf16.msra.mxu0 %v719
    %1064 = vmatprep.subr.bf16.mxu0 %v728
    %1065 = vmatpush1.bf16.msra.mxu0 %v727
    %1066 = vmatprep.subr.bf16.mxu0 %v736
    %1067 = vmatpush1.bf16.msra.mxu0 %v735
    %1068 = vmatprep.subr.bf16.mxu0 %v744
    %1069 = vmatpush1.bf16.msra.mxu0 %v743
    %1070 = vmatprep.subr.bf16.mxu0 %v752
    %1071 = vmatpush1.bf16.msra.mxu0 %v751
    %1072 = vmatprep.subr.bf16.mxu0 %v760
    %1073 = vmatpush1.bf16.msra.mxu0 %v759
    %1074 = vmatprep.subr.bf16.mxu0 %v768
    %1075 = vmatpush1.bf16.msra.mxu0 %v767
    %1076 = vmatprep.subr.bf16.mxu0 %v776
    %1077 = vmatpush1.bf16.msra.mxu0 %v775
    %1078 = vmatprep.subr.bf16.mxu0 %v784
    %1079 = vmatpush1.bf16.msra.mxu0 %v783
    %1080 = vmatprep.subr.bf16.mxu0 %v792
    %1081 = vmatpush1.bf16.msra.mxu0 %v791
    %1082 = vmatprep.mubr.bf16.mxu0 %v88
    %1083 = vmatmul.mubr.bf16.gmra.mrb[0].mxu0 %v87
    %v1084 = vpop.f32.mrb[0].mxu0
    %v1085 = vadd.f32 0.0, %v1084
    %v1086 = vpop.f32.mrb[0].mxu0
    %v1087 = vadd.f32 0.0, %v1086
    %v1088 = vpop.f32.mrb[0].mxu0
    %v1089 = vadd.f32 0.0, %v1088
    %v1090 = vpop.f32.mrb[0].mxu0
    %v1091 = vadd.f32 0.0, %v1090
    %1092 = vdwg.mxu0
    %v1157 = vunpack.c.l.b16 %v89
    %v1158 = vunpack.c.h.b16 %v89
    %v1159 = vunpack.c.l.b16 %v90
    %v1160 = vunpack.c.h.b16 %v90
    %v1161 = vunpack.c.l.b16 %v91
    %v1162 = vunpack.c.h.b16 %v91
    %v1163 = vunpack.c.l.b16 %v92
    %v1164 = vunpack.c.h.b16 %v92
    %v1165 = vunpack.c.l.b16 %v93
    %v1166 = vunpack.c.h.b16 %v93
    %v1167 = vunpack.c.l.b16 %v94
    %v1168 = vunpack.c.h.b16 %v94
    %v1169 = vunpack.c.l.b16 %v95
    %v1170 = vunpack.c.h.b16 %v95
    %v1171 = vunpack.c.l.b16 %v96
    %v1172 = vunpack.c.h.b16 %v96
    %v1173 = vunpack.c.l.b16 %v97
    %v1174 = vunpack.c.h.b16 %v97
    %v1175 = vunpack.c.l.b16 %v98
    %v1176 = vunpack.c.h.b16 %v98
    %v1177 = vunpack.c.l.b16 %v99
    %v1178 = vunpack.c.h.b16 %v99
    %v1179 = vunpack.c.l.b16 %v100
    %v1180 = vunpack.c.h.b16 %v100
    %v1181 = vunpack.c.l.b16 %v101
    %v1182 = vunpack.c.h.b16 %v101
    %v1183 = vunpack.c.l.b16 %v102
    %v1184 = vunpack.c.h.b16 %v102
    %v1185 = vunpack.c.l.b16 %v103
    %v1186 = vunpack.c.h.b16 %v103
    %v1187 = vunpack.c.l.b16 %v104
    %v1188 = vunpack.c.h.b16 %v104
    %v1189 = vunpack.c.l.b16 %v105
    %v1190 = vunpack.c.h.b16 %v105
    %v1191 = vunpack.c.l.b16 %v106
    %v1192 = vunpack.c.h.b16 %v106
    %v1193 = vunpack.c.l.b16 %v107
    %v1194 = vunpack.c.h.b16 %v107
    %v1195 = vunpack.c.l.b16 %v108
    %v1196 = vunpack.c.h.b16 %v108
    %v1197 = vunpack.c.l.b16 %v109
    %v1198 = vunpack.c.h.b16 %v109
    %v1199 = vunpack.c.l.b16 %v110
    %v1200 = vunpack.c.h.b16 %v110
    %v1201 = vunpack.c.l.b16 %v111
    %v1202 = vunpack.c.h.b16 %v111
    %v1203 = vunpack.c.l.b16 %v112
    %v1204 = vunpack.c.h.b16 %v112
    %v1205 = vunpack.c.l.b16 %v113
    %v1206 = vunpack.c.h.b16 %v113
    %v1207 = vunpack.c.l.b16 %v114
    %v1208 = vunpack.c.h.b16 %v114
    %v1209 = vunpack.c.l.b16 %v115
    %v1210 = vunpack.c.h.b16 %v115
    %v1211 = vunpack.c.l.b16 %v116
    %v1212 = vunpack.c.h.b16 %v116
    %v1213 = vunpack.c.l.b16 %v117
    %v1214 = vunpack.c.h.b16 %v117
    %v1215 = vunpack.c.l.b16 %v118
    %v1216 = vunpack.c.h.b16 %v118
    %v1217 = vunpack.c.l.b16 %v119
    %v1218 = vunpack.c.h.b16 %v119
    %v1219 = vunpack.c.l.b16 %v120
    %v1220 = vunpack.c.h.b16 %v120
    %v1221 = vunpack.c.l.b16 %v121
    %v1222 = vunpack.c.h.b16 %v121
    %v1223 = vunpack.c.l.b16 %v122
    %v1224 = vunpack.c.h.b16 %v122
    %v1225 = vunpack.c.l.b16 %v123
    %v1226 = vunpack.c.h.b16 %v123
    %v1227 = vunpack.c.l.b16 %v124
    %v1228 = vunpack.c.h.b16 %v124
    %v1229 = vunpack.c.l.b16 %v125
    %v1230 = vunpack.c.h.b16 %v125
    %v1231 = vunpack.c.l.b16 %v126
    %v1232 = vunpack.c.h.b16 %v126
    %v1233 = vunpack.c.l.b16 %v127
    %v1234 = vunpack.c.h.b16 %v127
    %v1235 = vunpack.c.l.b16 %v128
    %v1236 = vunpack.c.h.b16 %v128
    %v1237 = vunpack.c.l.b16 %v129
    %v1238 = vunpack.c.h.b16 %v129
    %v1239 = vunpack.c.l.b16 %v130
    %v1240 = vunpack.c.h.b16 %v130
    %v1241 = vunpack.c.l.b16 %v131
    %v1242 = vunpack.c.h.b16 %v131
    %v1243 = vunpack.c.l.b16 %v132
    %v1244 = vunpack.c.h.b16 %v132
    %v1245 = vunpack.c.l.b16 %v133
    %v1246 = vunpack.c.h.b16 %v133
    %v1247 = vunpack.c.l.b16 %v134
    %v1248 = vunpack.c.h.b16 %v134
    %v1249 = vunpack.c.l.b16 %v135
    %v1250 = vunpack.c.h.b16 %v135
    %v1251 = vunpack.c.l.b16 %v136
    %v1252 = vunpack.c.h.b16 %v136
    %v1253 = vunpack.c.l.b16 %v137
    %v1254 = vunpack.c.h.b16 %v137
    %v1255 = vunpack.c.l.b16 %v138
    %v1256 = vunpack.c.h.b16 %v138
    %v1257 = vunpack.c.l.b16 %v139
    %v1258 = vunpack.c.h.b16 %v139
    %v1259 = vunpack.c.l.b16 %v140
    %v1260 = vunpack.c.h.b16 %v140
    %v1261 = vunpack.c.l.b16 %v141
    %v1262 = vunpack.c.h.b16 %v141
    %v1263 = vunpack.c.l.b16 %v142
    %v1264 = vunpack.c.h.b16 %v142
    %v1265 = vunpack.c.l.b16 %v143
    %v1266 = vunpack.c.h.b16 %v143
    %v1267 = vunpack.c.l.b16 %v144
    %v1268 = vunpack.c.h.b16 %v144
    %v1269 = vunpack.c.l.b16 %v145
    %v1270 = vunpack.c.h.b16 %v145
    %v1271 = vunpack.c.l.b16 %v146
    %v1272 = vunpack.c.h.b16 %v146
    %v1273 = vunpack.c.l.b16 %v147
    %v1274 = vunpack.c.h.b16 %v147
    %v1275 = vunpack.c.l.b16 %v148
    %v1276 = vunpack.c.h.b16 %v148
    %v1277 = vunpack.c.l.b16 %v149
    %v1278 = vunpack.c.h.b16 %v149
    %v1279 = vunpack.c.l.b16 %v150
    %v1280 = vunpack.c.h.b16 %v150
    %v1281 = vunpack.c.l.b16 %v151
    %v1282 = vunpack.c.h.b16 %v151
    %v1283 = vunpack.c.l.b16 %v152
    %v1284 = vunpack.c.h.b16 %v152
    %v1285 = vpack.c.b16 %v1165, %v1157
    %v1286 = vpack.c.b16 %v1166, %v1158
    %v1287 = vpack.c.b16 %v1167, %v1159
    %v1288 = vpack.c.b16 %v1168, %v1160
    %v1289 = vpack.c.b16 %v1169, %v1161
    %v1290 = vpack.c.b16 %v1170, %v1162
    %v1291 = vpack.c.b16 %v1171, %v1163
    %v1292 = vpack.c.b16 %v1172, %v1164
    %v1293 = vpack.c.b16 %v1181, %v1173
    %v1294 = vpack.c.b16 %v1182, %v1174
    %v1295 = vpack.c.b16 %v1183, %v1175
    %v1296 = vpack.c.b16 %v1184, %v1176
    %v1297 = vpack.c.b16 %v1185, %v1177
    %v1298 = vpack.c.b16 %v1186, %v1178
    %v1299 = vpack.c.b16 %v1187, %v1179
    %v1300 = vpack.c.b16 %v1188, %v1180
    %v1301 = vpack.c.b16 %v1197, %v1189
    %v1302 = vpack.c.b16 %v1198, %v1190
    %v1303 = vpack.c.b16 %v1199, %v1191
    %v1304 = vpack.c.b16 %v1200, %v1192
    %v1305 = vpack.c.b16 %v1201, %v1193
    %v1306 = vpack.c.b16 %v1202, %v1194
    %v1307 = vpack.c.b16 %v1203, %v1195
    %v1308 = vpack.c.b16 %v1204, %v1196
    %v1309 = vpack.c.b16 %v1213, %v1205
    %v1310 = vpack.c.b16 %v1214, %v1206
    %v1311 = vpack.c.b16 %v1215, %v1207
    %v1312 = vpack.c.b16 %v1216, %v1208
    %v1313 = vpack.c.b16 %v1217, %v1209
    %v1314 = vpack.c.b16 %v1218, %v1210
    %v1315 = vpack.c.b16 %v1219, %v1211
    %v1316 = vpack.c.b16 %v1220, %v1212
    %v1317 = vpack.c.b16 %v1229, %v1221
    %v1318 = vpack.c.b16 %v1230, %v1222
    %v1319 = vpack.c.b16 %v1231, %v1223
    %v1320 = vpack.c.b16 %v1232, %v1224
    %v1321 = vpack.c.b16 %v1233, %v1225
    %v1322 = vpack.c.b16 %v1234, %v1226
    %v1323 = vpack.c.b16 %v1235, %v1227
    %v1324 = vpack.c.b16 %v1236, %v1228
    %v1325 = vpack.c.b16 %v1245, %v1237
    %v1326 = vpack.c.b16 %v1246, %v1238
    %v1327 = vpack.c.b16 %v1247, %v1239
    %v1328 = vpack.c.b16 %v1248, %v1240
    %v1329 = vpack.c.b16 %v1249, %v1241
    %v1330 = vpack.c.b16 %v1250, %v1242
    %v1331 = vpack.c.b16 %v1251, %v1243
    %v1332 = vpack.c.b16 %v1252, %v1244
    %v1333 = vpack.c.b16 %v1261, %v1253
    %v1334 = vpack.c.b16 %v1262, %v1254
    %v1335 = vpack.c.b16 %v1263, %v1255
    %v1336 = vpack.c.b16 %v1264, %v1256
    %v1337 = vpack.c.b16 %v1265, %v1257
    %v1338 = vpack.c.b16 %v1266, %v1258
    %v1339 = vpack.c.b16 %v1267, %v1259
    %v1340 = vpack.c.b16 %v1268, %v1260
    %v1341 = vpack.c.b16 %v1277, %v1269
    %v1342 = vpack.c.b16 %v1278, %v1270
    %v1343 = vpack.c.b16 %v1279, %v1271
    %v1344 = vpack.c.b16 %v1280, %v1272
    %v1345 = vpack.c.b16 %v1281, %v1273
    %v1346 = vpack.c.b16 %v1282, %v1274
    %v1347 = vpack.c.b16 %v1283, %v1275
    %v1348 = vpack.c.b16 %v1284, %v1276
    %1413 = vmatprep.subr.bf16.mxu0 %v1286
    %1414 = vmatpush1.bf16.msra.mxu0 %v1285
    %1415 = vmatprep.subr.bf16.mxu0 %v1294
    %1416 = vmatpush1.bf16.msra.mxu0 %v1293
    %1417 = vmatprep.subr.bf16.mxu0 %v1302
    %1418 = vmatpush1.bf16.msra.mxu0 %v1301
    %1419 = vmatprep.subr.bf16.mxu0 %v1310
    %1420 = vmatpush1.bf16.msra.mxu0 %v1309
    %1421 = vmatprep.subr.bf16.mxu0 %v1318
    %1422 = vmatpush1.bf16.msra.mxu0 %v1317
    %1423 = vmatprep.subr.bf16.mxu0 %v1326
    %1424 = vmatpush1.bf16.msra.mxu0 %v1325
    %1425 = vmatprep.subr.bf16.mxu0 %v1334
    %1426 = vmatpush1.bf16.msra.mxu0 %v1333
    %1427 = vmatprep.subr.bf16.mxu0 %v1342
    %1428 = vmatpush1.bf16.msra.mxu0 %v1341
    %1429 = vmatprep.subr.bf16.mxu0 0
    %1430 = vmatpush1.bf16.msra.mxu0 0
    %1431 = vmatprep.subr.bf16.mxu0 0
    %1432 = vmatpush1.bf16.msra.mxu0 0
    %1433 = vmatprep.subr.bf16.mxu0 0
    %1434 = vmatpush1.bf16.msra.mxu0 0
    %1435 = vmatprep.subr.bf16.mxu0 0
    %1436 = vmatpush1.bf16.msra.mxu0 0
    %1437 = vmatprep.subr.bf16.mxu0 0
    %1438 = vmatpush1.bf16.msra.mxu0 0
    %1439 = vmatprep.subr.bf16.mxu0 0
    %1440 = vmatpush1.bf16.msra.mxu0 0
    %1441 = vmatprep.subr.bf16.mxu0 0
    %1442 = vmatpush1.bf16.msra.mxu0 0
    %1443 = vmatprep.subr.bf16.mxu0 0
    %1444 = vmatpush1.bf16.msra.mxu0 0
    %1445 = vmatprep.mubr.bf16.mxu0 0
    %1446 = vmatmul.mubr.bf16.gmra.mrb[0].mxu0 %v82
    %v1447 = vpop.f32.mrb[0].mxu0
    %v1448 = vadd.f32 %v956, %v1447
    %v1449 = vpop.f32.mrb[0].mxu0
    %v1450 = vadd.f32 %v958, %v1449
    %v1451 = vpop.f32.mrb[0].mxu0
    %v1452 = vadd.f32 %v960, %v1451
    %v1453 = vpop.f32.mrb[0].mxu0
    %v1454 = vadd.f32 %v962, %v1453
    %1455 = vdwg.mxu0
    %1456 = vmatprep.subr.bf16.mxu0 %v1288
    %1457 = vmatpush1.bf16.msra.mxu0 %v1287
    %1458 = vmatprep.subr.bf16.mxu0 %v1296
    %1459 = vmatpush1.bf16.msra.mxu0 %v1295
    %1460 = vmatprep.subr.bf16.mxu0 %v1304
    %1461 = vmatpush1.bf16.msra.mxu0 %v1303
    %1462 = vmatprep.subr.bf16.mxu0 %v1312
    %1463 = vmatpush1.bf16.msra.mxu0 %v1311
    %1464 = vmatprep.subr.bf16.mxu0 %v1320
    %1465 = vmatpush1.bf16.msra.mxu0 %v1319
    %1466 = vmatprep.subr.bf16.mxu0 %v1328
    %1467 = vmatpush1.bf16.msra.mxu0 %v1327
    %1468 = vmatprep.subr.bf16.mxu0 %v1336
    %1469 = vmatpush1.bf16.msra.mxu0 %v1335
    %1470 = vmatprep.subr.bf16.mxu0 %v1344
    %1471 = vmatpush1.bf16.msra.mxu0 %v1343
    %1472 = vmatprep.subr.bf16.mxu0 0
    %1473 = vmatpush1.bf16.msra.mxu0 0
    %1474 = vmatprep.subr.bf16.mxu0 0
    %1475 = vmatpush1.bf16.msra.mxu0 0
    %1476 = vmatprep.subr.bf16.mxu0 0
    %1477 = vmatpush1.bf16.msra.mxu0 0
    %1478 = vmatprep.subr.bf16.mxu0 0
    %1479 = vmatpush1.bf16.msra.mxu0 0
    %1480 = vmatprep.subr.bf16.mxu0 0
    %1481 = vmatpush1.bf16.msra.mxu0 0
    %1482 = vmatprep.subr.bf16.mxu0 0
    %1483 = vmatpush1.bf16.msra.mxu0 0
    %1484 = vmatprep.subr.bf16.mxu0 0
    %1485 = vmatpush1.bf16.msra.mxu0 0
    %1486 = vmatprep.subr.bf16.mxu0 0
    %1487 = vmatpush1.bf16.msra.mxu0 0
    %1488 = vmatprep.mubr.bf16.mxu0 0
    %1489 = vmatmul.mubr.bf16.gmra.mrb[0].mxu0 %v82
    %v1490 = vpop.f32.mrb[0].mxu0
    %v1491 = vadd.f32 %v999, %v1490
    %v1492 = vpop.f32.mrb[0].mxu0
    %v1493 = vadd.f32 %v1001, %v1492
    %v1494 = vpop.f32.mrb[0].mxu0
    %v1495 = vadd.f32 %v1003, %v1494
    %v1496 = vpop.f32.mrb[0].mxu0
    %v1497 = vadd.f32 %v1005, %v1496
    %1498 = vdwg.mxu0
    %1499 = vmatprep.subr.bf16.mxu0 %v1290
    %1500 = vmatpush1.bf16.msra.mxu0 %v1289
    %1501 = vmatprep.subr.bf16.mxu0 %v1298
    %1502 = vmatpush1.bf16.msra.mxu0 %v1297
    %1503 = vmatprep.subr.bf16.mxu0 %v1306
    %1504 = vmatpush1.bf16.msra.mxu0 %v1305
    %1505 = vmatprep.subr.bf16.mxu0 %v1314
    %1506 = vmatpush1.bf16.msra.mxu0 %v1313
    %1507 = vmatprep.subr.bf16.mxu0 %v1322
    %1508 = vmatpush1.bf16.msra.mxu0 %v1321
    %1509 = vmatprep.subr.bf16.mxu0 %v1330
    %1510 = vmatpush1.bf16.msra.mxu0 %v1329
    %1511 = vmatprep.subr.bf16.mxu0 %v1338
    %1512 = vmatpush1.bf16.msra.mxu0 %v1337
    %1513 = vmatprep.subr.bf16.mxu0 %v1346
    %1514 = vmatpush1.bf16.msra.mxu0 %v1345
    %1515 = vmatprep.subr.bf16.mxu0 0
    %1516 = vmatpush1.bf16.msra.mxu0 0
    %1517 = vmatprep.subr.bf16.mxu0 0
    %1518 = vmatpush1.bf16.msra.mxu0 0
    %1519 = vmatprep.subr.bf16.mxu0 0
    %1520 = vmatpush1.bf16.msra.mxu0 0
    %1521 = vmatprep.subr.bf16.mxu0 0
    %1522 = vmatpush1.bf16.msra.mxu0 0
    %1523 = vmatprep.subr.bf16.mxu0 0
    %1524 = vmatpush1.bf16.msra.mxu0 0
    %1525 = vmatprep.subr.bf16.mxu0 0
    %1526 = vmatpush1.bf16.msra.mxu0 0
    %1527 = vmatprep.subr.bf16.mxu0 0
    %1528 = vmatpush1.bf16.msra.mxu0 0
    %1529 = vmatprep.subr.bf16.mxu0 0
    %1530 = vmatpush1.bf16.msra.mxu0 0
    %1531 = vmatprep.mubr.bf16.mxu0 0
    %1532 = vmatmul.mubr.bf16.gmra.mrb[0].mxu0 %v82
    %v1533 = vpop.f32.mrb[0].mxu0
    %v1534 = vadd.f32 %v1042, %v1533
    %v1535 = vpop.f32.mrb[0].mxu0
    %v1536 = vadd.f32 %v1044, %v1535
    %v1537 = vpop.f32.mrb[0].mxu0
    %v1538 = vadd.f32 %v1046, %v1537
    %v1539 = vpop.f32.mrb[0].mxu0
    %v1540 = vadd.f32 %v1048, %v1539
    %1541 = vdwg.mxu0
    %1542 = vmatprep.subr.bf16.mxu0 %v1292
    %1543 = vmatpush1.bf16.msra.mxu0 %v1291
    %1544 = vmatprep.subr.bf16.mxu0 %v1300
    %1545 = vmatpush1.bf16.msra.mxu0 %v1299
    %1546 = vmatprep.subr.bf16.mxu0 %v1308
    %1547 = vmatpush1.bf16.msra.mxu0 %v1307
    %1548 = vmatprep.subr.bf16.mxu0 %v1316
    %1549 = vmatpush1.bf16.msra.mxu0 %v1315
    %1550 = vmatprep.subr.bf16.mxu0 %v1324
    %1551 = vmatpush1.bf16.msra.mxu0 %v1323
    %1552 = vmatprep.subr.bf16.mxu0 %v1332
    %1553 = vmatpush1.bf16.msra.mxu0 %v1331
    %1554 = vmatprep.subr.bf16.mxu0 %v1340
    %1555 = vmatpush1.bf16.msra.mxu0 %v1339
    %1556 = vmatprep.subr.bf16.mxu0 %v1348
    %1557 = vmatpush1.bf16.msra.mxu0 %v1347
    %1558 = vmatprep.subr.bf16.mxu0 0
    %1559 = vmatpush1.bf16.msra.mxu0 0
    %1560 = vmatprep.subr.bf16.mxu0 0
    %1561 = vmatpush1.bf16.msra.mxu0 0
    %1562 = vmatprep.subr.bf16.mxu0 0
    %1563 = vmatpush1.bf16.msra.mxu0 0
    %1564 = vmatprep.subr.bf16.mxu0 0
    %1565 = vmatpush1.bf16.msra.mxu0 0
    %1566 = vmatprep.subr.bf16.mxu0 0
    %1567 = vmatpush1.bf16.msra.mxu0 0
    %1568 = vmatprep.subr.bf16.mxu0 0
    %1569 = vmatpush1.bf16.msra.mxu0 0
    %1570 = vmatprep.subr.bf16.mxu0 0
    %1571 = vmatpush1.bf16.msra.mxu0 0
    %1572 = vmatprep.subr.bf16.mxu0 0
    %1573 = vmatpush1.bf16.msra.mxu0 0
    %1574 = vmatprep.mubr.bf16.mxu0 0
    %1575 = vmatmul.mubr.bf16.gmra.mrb[0].mxu0 %v82
    %v1576 = vpop.f32.mrb[0].mxu0
    %v1577 = vadd.f32 %v1085, %v1576
    %v1578 = vpop.f32.mrb[0].mxu0
    %v1579 = vadd.f32 %v1087, %v1578
    %v1580 = vpop.f32.mrb[0].mxu0
    %v1581 = vadd.f32 %v1089, %v1580
    %v1582 = vpop.f32.mrb[0].mxu0
    %v1583 = vadd.f32 %v1091, %v1582
    %1584 = vdwg.mxu0
    %v1585 = vld [vmem:[%s4] sm:$0xff]
    %v1587 = vlaneseq
    %v1588 = vshrl.u32 %v1587, 7
    %v1589 = vsub.s32 0, %v1588
    %v1590 = vrot.slane %v1585, %v1589
    %v1591 = vlaneseq
    %v1592 = vshrl.u32 %v1591, 7
    %v1593 = vsub.s32 1, %v1592
    %v1594 = vrot.slane %v1585, %v1593
    %v1595 = vlaneseq
    %v1596 = vshrl.u32 %v1595, 7
    %v1597 = vsub.s32 2, %v1596
    %v1598 = vrot.slane %v1585, %v1597
    %v1599 = vlaneseq
    %v1600 = vshrl.u32 %v1599, 7
    %v1601 = vsub.s32 3, %v1600
    %v1602 = vrot.slane %v1585, %v1601
    %v1603 = vlaneseq
    %v1604 = vshrl.u32 %v1603, 7
    %v1605 = vsub.s32 4, %v1604
    %v1606 = vrot.slane %v1585, %v1605
    %v1607 = vlaneseq
    %v1608 = vshrl.u32 %v1607, 7
    %v1609 = vsub.s32 5, %v1608
    %v1610 = vrot.slane %v1585, %v1609
    %v1611 = vlaneseq
    %v1612 = vshrl.u32 %v1611, 7
    %v1613 = vsub.s32 6, %v1612
    %v1614 = vrot.slane %v1585, %v1613
    %v1615 = vlaneseq
    %v1616 = vshrl.u32 %v1615, 7
    %v1617 = vsub.s32 7, %v1616
    %v1618 = vrot.slane %v1585, %v1617
    %v1627 = vadd.f32 %v1448, %v1590
    %v1628 = vadd.f32 %v1450, %v1594
    %v1629 = vadd.f32 %v1491, %v1598
    %v1630 = vadd.f32 %v1493, %v1602
    %v1631 = vadd.f32 %v1534, %v1606
    %v1632 = vadd.f32 %v1536, %v1610
    %v1633 = vadd.f32 %v1577, %v1614
    %v1634 = vadd.f32 %v1579, %v1618
    %v1635 = vadd.f32 %v1452, %v1590
    %v1636 = vadd.f32 %v1454, %v1594
    %v1637 = vadd.f32 %v1495, %v1598
    %v1638 = vadd.f32 %v1497, %v1602
    %v1639 = vadd.f32 %v1538, %v1606
    %v1640 = vadd.f32 %v1540, %v1610
    %v1641 = vadd.f32 %v1581, %v1614
    %v1642 = vadd.f32 %v1583, %v1618
    %v1643 = vxor.u32 %v1627, 2147483648
    %v1644 = vxor.u32 %v1628, 2147483648
    %v1645 = vxor.u32 %v1629, 2147483648
    %v1646 = vxor.u32 %v1630, 2147483648
    %v1647 = vxor.u32 %v1631, 2147483648
    %v1648 = vxor.u32 %v1632, 2147483648
    %v1649 = vxor.u32 %v1635, 2147483648
    %v1650 = vxor.u32 %v1636, 2147483648
    %v1651 = vxor.u32 %v1637, 2147483648
    %v1652 = vxor.u32 %v1638, 2147483648
    %v1653 = vxor.u32 %v1639, 2147483648
    %v1654 = vxor.u32 %v1640, 2147483648
    %v1655 = vmul.f32 %v1643, 1.442695
    %v1656 = vpow.pop %v1655
    %v1657 = vmul.f32 %v1644, 1.442695
    %v1658 = vpow.pop %v1657
    %v1659 = vmul.f32 %v1645, 1.442695
    %v1660 = vpow.pop %v1659
    %v1661 = vmul.f32 %v1646, 1.442695
    %v1662 = vpow.pop %v1661
    %v1663 = vmul.f32 %v1647, 1.442695
    %v1664 = vpow.pop %v1663
    %v1665 = vmul.f32 %v1648, 1.442695
    %v1666 = vpow.pop %v1665
    %v1667 = vmul.f32 %v1649, 1.442695
    %v1668 = vpow.pop %v1667
    %v1669 = vmul.f32 %v1650, 1.442695
    %v1670 = vpow.pop %v1669
    %v1671 = vmul.f32 %v1651, 1.442695
    %v1672 = vpow.pop %v1671
    %v1673 = vmul.f32 %v1652, 1.442695
    %v1674 = vpow.pop %v1673
    %v1675 = vmul.f32 %v1653, 1.442695
    %v1676 = vpow.pop %v1675
    %v1677 = vmul.f32 %v1654, 1.442695
    %v1678 = vpow.pop %v1677
    %v1679 = vadd.f32 %v1656, 1.0
    %v1680 = vadd.f32 %v1658, 1.0
    %v1681 = vadd.f32 %v1660, 1.0
    %v1682 = vadd.f32 %v1662, 1.0
    %v1683 = vadd.f32 %v1664, 1.0
    %v1684 = vadd.f32 %v1666, 1.0
    %v1685 = vadd.f32 %v1668, 1.0
    %v1686 = vadd.f32 %v1670, 1.0
    %v1687 = vadd.f32 %v1672, 1.0
    %v1688 = vadd.f32 %v1674, 1.0
    %v1689 = vadd.f32 %v1676, 1.0
    %v1690 = vadd.f32 %v1678, 1.0
    %v1691 = vrcp.pop %v1679
    %v1692 = vmul.f32 1.0, %v1691
    %v1693 = vrcp.pop %v1680
    %v1694 = vmul.f32 1.0, %v1693
    %v1695 = vrcp.pop %v1681
    %v1696 = vmul.f32 1.0, %v1695
    %v1697 = vrcp.pop %v1682
    %v1698 = vmul.f32 1.0, %v1697
    %v1699 = vrcp.pop %v1683
    %v1700 = vmul.f32 1.0, %v1699
    %v1701 = vrcp.pop %v1684
    %v1702 = vmul.f32 1.0, %v1701
    %v1703 = vrcp.pop %v1685
    %v1704 = vmul.f32 1.0, %v1703
    %v1705 = vrcp.pop %v1686
    %v1706 = vmul.f32 1.0, %v1705
    %v1707 = vrcp.pop %v1687
    %v1708 = vmul.f32 1.0, %v1707
    %v1709 = vrcp.pop %v1688
    %v1710 = vmul.f32 1.0, %v1709
    %v1711 = vrcp.pop %v1689
    %v1712 = vmul.f32 1.0, %v1711
    %v1713 = vrcp.pop %v1690
    %v1714 = vmul.f32 1.0, %v1713
    %v1715 = vtanh.pop %v1633
    %v1716 = vtanh.pop %v1634
    %v1717 = vtanh.pop %v1641
    %v1718 = vtanh.pop %v1642
    %v1719 = vld [vmem:[#allocation7] sm:$0xff]
    %v1720 = vld [vmem:[#allocation7 + $0x8] sm:$0xff]
    %v1721 = vld [vmem:[#allocation7 + $0x10] sm:$0xff]
    %v1722 = vld [vmem:[#allocation7 + $0x18] sm:$0xff]
    %v1723 = vmul.f32 %v1719, %v1692
    %v1724 = vmul.f32 %v1720, %v1694
    %v1725 = vmul.f32 %v1721, %v1704
    %v1726 = vmul.f32 %v1722, %v1706
    %v1727 = vmul.f32 %v1715, %v1696
    %v1728 = vmul.f32 %v1716, %v1698
    %v1729 = vmul.f32 %v1717, %v1708
    %v1730 = vmul.f32 %v1718, %v1710
    %v1731 = vadd.f32 %v1723, %v1727
    %v1732 = vadd.f32 %v1724, %v1728
    %v1733 = vadd.f32 %v1725, %v1729
    %v1734 = vadd.f32 %v1726, %v1730
    %v1735 = vtanh.pop %v1731
    %v1736 = vtanh.pop %v1732
    %v1737 = vtanh.pop %v1733
    %v1738 = vtanh.pop %v1734
    %v1739 = vmul.f32 %v1700, %v1735
    %v1740 = vmul.f32 %v1702, %v1736
    %v1741 = vmul.f32 %v1712, %v1737
    %v1742 = vmul.f32 %v1714, %v1738
    %1743 = vst [vmem:[#allocation11] sm:$0xff] %v1731
    %1744 = vst [vmem:[#allocation11 + $0x8] sm:$0xff] %v1732
    %1745 = vst [vmem:[#allocation11 + $0x10] sm:$0xff] %v1733
    %1746 = vst [vmem:[#allocation11 + $0x18] sm:$0xff] %v1734
    %1747 = vst [vmem:[#allocation10] sm:$0xff] %v1739
    %1748 = vst [vmem:[#allocation10 + $0x8] sm:$0xff] %v1740
    %1749 = vst [vmem:[#allocation10 + $0x10] sm:$0xff] %v1741
    %1750 = vst [vmem:[#allocation10 + $0x18] sm:$0xff] %v1742
    // Predicated region
    $region38: #{lstm_cell.1} parent=1 // pred_check
      _
    $region39: #{lstm_cell.1} parent=1 // pred_check_branch
      %1752 = sbr.rel (0) target = $region41
    $region40: #{lstm_cell.1} parent=1 // pred_region
      %s1754 = ssub.s32 512, 512
      %1755 = vsyncadd [#allocation4], %s1754
      %s1756 = sshll.u32 [#allocation10], 4
      %s1757 = int_to_ptr.vmem [resolvable:$true] %s1756
      %1762 = dma.vmem_to_hbm [thread:$0]  %s1757, 512, %s5, [#allocation4], 256, 256, 16
    $region41: #{lstm_cell.1} parent=1 // pred_fallthru
      _
    // Predicated region
    $region42: #{lstm_cell.1} parent=1 // pred_check
      _
    $region43: #{lstm_cell.1} parent=1 // pred_check_branch
      %1764 = sbr.rel (0) target = $region45
    $region44: #{lstm_cell.1} parent=1 // pred_region
      %s1766 = ssub.s32 512, 512
      %1767 = vsyncadd [#allocation12], %s1766
      %s1768 = sshll.u32 [#allocation11], 4
      %s1769 = int_to_ptr.vmem [resolvable:$true] %s1768
      %1774 = dma.vmem_to_hbm [thread:$0]  %s1769, 512, %s6, [#allocation12], 256, 256, 16
    $region45: #{lstm_cell.1} parent=1 // pred_fallthru
      _
    // Predicated region
    $region46: #{lstm_cell.1} parent=1 // pred_check
      _
    $region47: #{lstm_cell.1} parent=1 // pred_check_branch
      %1776 = sbr.rel (0) target = $region49
    $region48: #{lstm_cell.1} parent=1 // pred_region
      %1777 = dma.done [#allocation4], 512
    $region49: #{lstm_cell.1} parent=1 // pred_fallthru
      _
    // Predicated region
    $region50: #{lstm_cell.1} parent=1 // pred_check
      _
    $region51: #{lstm_cell.1} parent=1 // pred_check_branch
      %1779 = sbr.rel (0) target = $region53
    $region52: #{lstm_cell.1} parent=1 // pred_region
      %1780 = dma.done [#allocation12], 512
    $region53: #{lstm_cell.1} parent=1 // pred_fallthru
      _
    %1781 = vsyncpa [#allocation3], 1
    %1782 = vsyncpa [#allocation6], 1
    %1783 = vsyncpa [#allocation9], 1
    %1784 = vsyncpa [#allocation4], 1
    %1785 = vsyncpa [#allocation12], 1

</llo_original>
